<compile_context>
chip_gen: v5e
topology: v5e:2x2
jax: 0.10.0
libtpu: 0.0.40
codegen_flags: <defaults>
</compile_context>

<pallas_src>
import functools

import jax
import jax.numpy as jnp
from jax.experimental import pallas as pl
from jax.experimental.pallas import tpu as pltpu

LANE = 128
_VMEM_LIMIT = 32 * 1024 * 1024


def _round_up(x, m):
    return ((x + m - 1) // m) * m


# ----------------------------------------------------------------------------
# Kernel 1: fused matmul(s) + bias (+ residual) (+ ReLU)   -- 1x1 convolutions
# ----------------------------------------------------------------------------
def _mm_kernel(*refs, relu, has_res, has_second):
    if has_second:
        x_ref, w_ref, b_ref, x2_ref, w2_ref, b2_ref, o_ref = refs
    elif has_res:
        x_ref, w_ref, b_ref, res_ref, o_ref = refs
    else:
        x_ref, w_ref, b_ref, o_ref = refs
    y = jnp.dot(x_ref[...], w_ref[...], preferred_element_type=jnp.float32)
    y = y + b_ref[...]
    if has_second:
        y = y + jnp.dot(x2_ref[...], w2_ref[...],
                        preferred_element_type=jnp.float32)
        y = y + b2_ref[...]
    if has_res:
        y = y + res_ref[...].astype(jnp.float32)
    if relu:
        y = jnp.maximum(y, 0.0)
    o_ref[...] = y.astype(o_ref.dtype)


def matmul_fused(x, w, b, *, x2=None, w2=None, b2=None, residual=None,
                 relu=True, out_dtype=jnp.bfloat16):
    """act(x @ w + b [+ x2 @ w2 + b2] [+ residual]); bf16 MXU, f32 epilogue."""
    assert not (x2 is not None and residual is not None)
    M, K = x.shape
    N = w.shape[1]
    assert N % LANE == 0 and K % LANE == 0

    tm = min(256, _round_up(M, 8))
    Mp = _round_up(M, tm)
    tn = 256 if N % 256 == 0 else LANE

    if Mp != M:                                   # padded (not degenerate) tail
        rows = ((0, Mp - M), (0, 0))
        x = jnp.pad(x, rows)
        if x2 is not None:
            x2 = jnp.pad(x2, rows)
        if residual is not None:
            residual = jnp.pad(residual, rows)

    args = [x, w, b.reshape(1, N).astype(jnp.float32)]
    in_specs = [
        pl.BlockSpec((tm, K), lambda i, j: (i, 0)),
        pl.BlockSpec((K, tn), lambda i, j: (0, j)),
        pl.BlockSpec((1, tn), lambda i, j: (0, j)),
    ]
    if x2 is not None:
        K2 = x2.shape[1]
        args += [x2, w2, b2.reshape(1, N).astype(jnp.float32)]
        in_specs += [
            pl.BlockSpec((tm, K2), lambda i, j: (i, 0)),
            pl.BlockSpec((K2, tn), lambda i, j: (0, j)),
            pl.BlockSpec((1, tn), lambda i, j: (0, j)),
        ]
    if residual is not None:
        args.append(residual)
        in_specs.append(pl.BlockSpec((tm, tn), lambda i, j: (i, j)))

    kernel = functools.partial(_mm_kernel, relu=relu,
                               has_res=residual is not None,
                               has_second=x2 is not None)
    out = pl.pallas_call(
        kernel,
        out_shape=jax.ShapeDtypeStruct((Mp, N), out_dtype),
        grid_spec=pltpu.PrefetchScalarGridSpec(
            num_scalar_prefetch=0,
            grid=(Mp // tm, N // tn),
            in_specs=in_specs,
            out_specs=pl.BlockSpec((tm, tn), lambda i, j: (i, j)),
        ),
        compiler_params=pltpu.CompilerParams(
            dimension_semantics=("parallel", "parallel"),
            vmem_limit_bytes=_VMEM_LIMIT),
    )(*args)
    return out[:M] if Mp != M else out


# ----------------------------------------------------------------------------
# Kernel 2: 3x3 conv + bias + ReLU, taps formed in VMEM (no HBM im2col)
# ----------------------------------------------------------------------------
def _conv3x3_kernel(ph_ref, w_ref, b_ref, o_ref, *, stride, Ho, Wo, relu):
    s = stride
    cp = ph_ref.shape[-1]
    tn = o_ref.shape[-1]
    acc = jnp.zeros((Ho * Wo, tn), jnp.float32)
    for t in range(9):                       # static unroll over the 3x3 taps
        dh, dw = divmod(t, 3)
        p = (dh % s) * s + (dw % s)          # phase holding this tap
        tap = ph_ref[p, pl.ds(dh // s, Ho), pl.ds(dw // s, Wo), :]
        acc = acc + jnp.dot(tap.reshape(Ho * Wo, cp), w_ref[t],
                            preferred_element_type=jnp.float32)
    y = acc + b_ref[...]
    if relu:
        y = jnp.maximum(y, 0.0)
    o_ref[...] = y.reshape(1, Ho, Wo, tn).astype(o_ref.dtype)


def conv3x3_fused(x, w9, b, stride, relu=True, out_dtype=jnp.bfloat16):
    """3x3 conv (padding=1) + bias + ReLU.  x:(N,H,W,Cp) bf16, w9:(9,Cp,Co)."""
    N, H, W, Cp = x.shape
    Co = w9.shape[-1]
    s = stride
    Ho = (H - 1) // s + 1
    Wo = (W - 1) // s + 1
    Hp = _round_up(H + 2, s)
    Wp = _round_up(W + 2, s)
    xp = jnp.pad(x, ((0, 0), (1, Hp - H - 1), (1, Wp - W - 1), (0, 0)))
    if s == 1:
        ph = xp                                           # (N, Hp, Wp, Cp)
    else:
        # phase decomposition: one extra pass over the input instead of a 9x
        # im2col expansion; taps become plain (unstrided) VMEM slices.
        ph = jnp.stack([xp[:, a::s, c::s, :]
                        for a in range(s) for c in range(s)], axis=1)
        ph = ph.reshape(N * s * s, Hp // s, Wp // s, Cp)
    s2 = s * s
    Hps, Wps = Hp // s, Wp // s
    tn = 256 if Co % 256 == 0 else LANE

    kernel = functools.partial(_conv3x3_kernel, stride=s, Ho=Ho, Wo=Wo,
                               relu=relu)
    return pl.pallas_call(
        kernel,
        out_shape=jax.ShapeDtypeStruct((N, Ho, Wo, Co), out_dtype),
        grid_spec=pltpu.PrefetchScalarGridSpec(
            num_scalar_prefetch=0,
            grid=(N, Co // tn),
            in_specs=[
                pl.BlockSpec((s2, Hps, Wps, Cp), lambda bi, ni: (bi, 0, 0, 0)),
                pl.BlockSpec((9, Cp, tn), lambda bi, ni: (0, 0, ni)),
                pl.BlockSpec((1, tn), lambda bi, ni: (0, ni)),
            ],
            out_specs=pl.BlockSpec((1, Ho, Wo, tn),
                                   lambda bi, ni: (bi, 0, 0, ni)),
        ),
        compiler_params=pltpu.CompilerParams(
            dimension_semantics=("parallel", "parallel"),
            vmem_limit_bytes=_VMEM_LIMIT),
    )(ph, w9, b.reshape(1, Co).astype(jnp.float32))


# ----------------------------------------------------------------------------
# Parameter folding (BN -> weights/bias) and padding helpers
# ----------------------------------------------------------------------------
def fold_bn(gamma, beta, mean, var, eps=1e-5):
    scale = gamma / jnp.sqrt(var + eps)
    bias = beta - mean * scale
    return scale, bias


def _pad_axis(a, axis, new_size):
    pad = [(0, 0)] * a.ndim
    pad[axis] = (0, new_size - a.shape[axis])
    return jnp.pad(a, pad)


def _fold_1x1(w, bn, cin_p, cout_p):
    scale, bias = fold_bn(*bn)
    wf = _pad_axis(_pad_axis(w * scale[None, :], 0, cin_p), 1, cout_p)
    return wf.astype(jnp.bfloat16), _pad_axis(bias, 0, cout_p).astype(jnp.float32)


def _fold_3x3(w, bn, cin_p, cout_p):
    scale, bias = fold_bn(*bn)
    wf = _pad_axis(_pad_axis(w * scale[None, None, None, :], 2, cin_p), 3, cout_p)
    wf = wf.reshape(9, cin_p, cout_p)
    return wf.astype(jnp.bfloat16), _pad_axis(bias, 0, cout_p).astype(jnp.float32)


# ----------------------------------------------------------------------------
# Bottleneck module: params + forward
# ----------------------------------------------------------------------------
def init_bottleneck_params(key, in_c, out_c, stride):
    mid = out_c // 4
    ks = list(jax.random.split(key, 8))

    def conv_w(k, kh, kw, cin, cout):
        fan_in = kh * kw * cin
        w = jax.random.normal(k, (kh, kw, cin, cout), jnp.float32)
        return w / jnp.sqrt(float(fan_in))

    def bn_params(k, c):
        k1, k2, k3, k4 = jax.random.split(k, 4)
        gamma = 1.0 + 0.1 * jax.random.normal(k1, (c,), jnp.float32)
        beta = 0.1 * jax.random.normal(k2, (c,), jnp.float32)
        mean = 0.1 * jax.random.normal(k3, (c,), jnp.float32)
        var = jnp.abs(jax.random.normal(k4, (c,), jnp.float32)) + 0.5
        return gamma, beta, mean, var

    params = {
        "w1": conv_w(ks[0], 1, 1, in_c, mid).reshape(in_c, mid),
        "bn1": bn_params(ks[1], mid),
        "w2": conv_w(ks[2], 3, 3, mid, mid),
        "bn2": bn_params(ks[3], mid),
        "w3": conv_w(ks[4], 1, 1, mid, out_c).reshape(mid, out_c),
        "bn3": bn_params(ks[5], out_c),
    }
    if not (stride == 1 and in_c == out_c):
        params["w_sc"] = conv_w(ks[6], 1, 1, in_c, out_c).reshape(in_c, out_c)
        params["bn_sc"] = bn_params(ks[7], out_c)
    return params


def bottleneck_forward(x_nchw, params, stride, in_c, out_c):
    # TODO(synk): BatchNorm implemented in inference mode (running stats folded
    # into per-channel scale/bias); training-mode batch statistics not modeled.
    N, _, H, W = x_nchw.shape
    cin_p = _round_up(in_c, LANE)
    mid_p = _round_up(out_c // 4, LANE)
    out_p = _round_up(out_c, LANE)

    # NCHW -> NHWC (channels on the lane axis), lane-pad channels, cast bf16.
    x = jnp.transpose(x_nchw, (0, 2, 3, 1))
    xb = _pad_axis(x, 3, cin_p).astype(jnp.bfloat16)

    w1, b1 = _fold_1x1(params["w1"], params["bn1"], cin_p, mid_p)
    w2, b2 = _fold_3x3(params["w2"], params["bn2"], mid_p, mid_p)
    w3, b3 = _fold_1x1(params["w3"], params["bn3"], mid_p, out_p)

    # conv1 (1x1) + BN + ReLU
    h = matmul_fused(xb.reshape(N * H * W, cin_p), w1, b1, relu=True)
    h = h.reshape(N, H, W, mid_p)

    # conv2 (3x3, stride) + BN + ReLU -- taps formed in VMEM
    h = conv3x3_fused(h, w2, b2, stride, relu=True)
    Ho, Wo = h.shape[1], h.shape[2]
    h2d = h.reshape(N * Ho * Wo, mid_p)

    # conv3 (1x1) + BN fused with the shortcut and the final ReLU
    if stride == 1 and in_c == out_c:
        out2d = matmul_fused(h2d, w3, b3,
                             residual=xb.reshape(N * H * W, cin_p),
                             relu=True, out_dtype=jnp.float32)
    else:
        wsc, bsc = _fold_1x1(params["w_sc"], params["bn_sc"], cin_p, out_p)
        xs = xb[:, ::stride, ::stride, :].reshape(N * Ho * Wo, cin_p)
        out2d = matmul_fused(h2d, w3, b3, x2=xs, w2=wsc, b2=bsc,
                             relu=True, out_dtype=jnp.float32)

    out = out2d.reshape(N, Ho, Wo, out_p)[:, :, :, :out_c]
    return jnp.transpose(out, (0, 3, 1, 2))        # NHWC -> NCHW


# ----------------------------------------------------------------------------
# XLA reference mirroring the kernel numerics (bf16 operands, f32 accumulation)
# ----------------------------------------------------------------------------
def reference_forward(x_nchw, params, stride, in_c, out_c):
    mid = out_c // 4
    x = jnp.transpose(x_nchw, (0, 2, 3, 1)).astype(jnp.bfloat16)

    def conv(h, w4, s, padding):
        return jax.lax.conv_general_dilated(
            h, w4.astype(jnp.bfloat16), (s, s), padding,
            dimension_numbers=("NHWC", "HWIO", "NHWC"),
            preferred_element_type=jnp.float32)

    def fold_w(w4, bn):
        s, b = fold_bn(*bn)
        return w4 * s, b

    w1, b1 = fold_w(params["w1"].reshape(1, 1, in_c, mid), params["bn1"])
    h = jax.nn.relu(conv(x, w1, 1, "VALID") + b1).astype(jnp.bfloat16)
    w2, b2 = fold_w(params["w2"], params["bn2"])
    h = jax.nn.relu(conv(h, w2, stride, [(1, 1), (1, 1)]) + b2).astype(jnp.bfloat16)
    w3, b3 = fold_w(params["w3"].reshape(1, 1, mid, out_c), params["bn3"])
    y = conv(h, w3, 1, "VALID") + b3
    if stride == 1 and in_c == out_c:
        sc = x.astype(jnp.float32)
    else:
        wsc, bsc = fold_w(params["w_sc"].reshape(1, 1, in_c, out_c),
                          params["bn_sc"])
        sc = conv(x, wsc, stride, "VALID") + bsc
    return jnp.transpose(jax.nn.relu(y + sc), (0, 3, 1, 2))


# ----------------------------------------------------------------------------
if __name__ == "__main__":
    B, H, W = 2, 16, 16
    configs = [
        (32, 64, 2),   # projection shortcut, strided 3x3 (phase-decomposed)
        (64, 64, 1),   # identity shortcut, stride-1 3x3
    ]

    key = jax.random.PRNGKey(0)
    for in_c, out_c, stride in configs:
        key, kx, kp = jax.random.split(key, 3)
        x = jax.random.normal(kx, (B, in_c, H, W), jnp.float32)   # NCHW
        params = init_bottleneck_params(kp, in_c, out_c, stride)

        fwd = jax.jit(functools.partial(
            bottleneck_forward, stride=stride, in_c=in_c, out_c=out_c))
        out = jax.block_until_ready(fwd(x, params))

        Ho = (H - 1) // stride + 1
        Wo = (W - 1) // stride + 1
        assert out.shape == (B, out_c, Ho, Wo), out.shape

        ref = reference_forward(x, params, stride, in_c, out_c)
        err = float(jnp.max(jnp.abs(out - ref)))
        assert err < 2e-2, err

    print("KERNEL_OK")
</pallas_src>

<mosaic_0001>
module attributes {stable_mosaic.version = 11 : i64} {
  func.func @_mm_kernel(%arg0: i32, %arg1: i32, %arg2: memref<256x128xbf16, #tpu.memory_space<vmem>>, %arg3: memref<128x128xbf16, #tpu.memory_space<vmem>>, %arg4: memref<1x128xf32, #tpu.memory_space<vmem>>, %arg5: memref<256x128xbf16, #tpu.memory_space<vmem>>) attributes {dimension_semantics = [#tpu.dimension_semantics<parallel>, #tpu.dimension_semantics<parallel>], iteration_bounds = array<i64: 2, 1>, scalar_prefetch = 0 : i64, scratch_operands = 0 : i64, tpu.core_type = #tpu.core_type<tc>, window_params = [{transform_indices = @transform_0, window_bounds = array<i64: 256, 128>}, {transform_indices = @transform_1, window_bounds = array<i64: 128, 128>}, {transform_indices = @transform_2, window_bounds = array<i64: 1, 128>}, {transform_indices = @transform_3, window_bounds = array<i64: 256, 128>}]} {
    %c0 = arith.constant 0 : index
    %c0_0 = arith.constant 0 : index
    %0 = vector.load %arg2[%c0, %c0_0] : memref<256x128xbf16, #tpu.memory_space<vmem>>, vector<256x128xbf16>
    %c0_1 = arith.constant 0 : index
    %c0_2 = arith.constant 0 : index
    %1 = vector.load %arg3[%c0_1, %c0_2] : memref<128x128xbf16, #tpu.memory_space<vmem>>, vector<128x128xbf16>
    %cst = arith.constant dense<0.000000e+00> : vector<256x128xf32>
    %2 = tpu.matmul %0, %1, %cst {dimension_numbers = #tpu.dot_dimension_numbers<[1], [0], [0], [1], [0, 0, 1, 1], [], []>} : vector<256x128xbf16>, vector<128x128xbf16>, vector<256x128xf32> -> vector<256x128xf32>
    %c0_3 = arith.constant 0 : index
    %c0_4 = arith.constant 0 : index
    %3 = vector.load %arg4[%c0_3, %c0_4] : memref<1x128xf32, #tpu.memory_space<vmem>>, vector<1x128xf32>
    %4 = vector.broadcast %3 : vector<1x128xf32> to vector<256x128xf32>
    %5 = arith.addf %2, %4 : vector<256x128xf32>
    %cst_5 = arith.constant 0.000000e+00 : f32
    %6 = vector.broadcast %cst_5 : f32 to vector<256x128xf32>
    %7 = arith.maximumf %5, %6 : vector<256x128xf32>
    %8 = arith.truncf %7 : vector<256x128xf32> to vector<256x128xbf16>
    %c0_6 = arith.constant 0 : index
    %c0_7 = arith.constant 0 : index
    %9 = vector.load %arg5[%c0_6, %c0_7] : memref<256x128xbf16, #tpu.memory_space<vmem>>, vector<256x128xbf16>
    tpu.vector_store %arg5[%c0_6, %c0_7], %8 {strides = array<i32>} : memref<256x128xbf16, #tpu.memory_space<vmem>>, vector<256x128xbf16>,
    return
  }
  func.func @transform_0(%arg0: i32, %arg1: i32) -> (i32, i32) {
    %c0_i32 = arith.constant 0 : i32
    %c0_i32_0 = arith.constant 0 : i32
    return %arg0, %c0_i32 : i32, i32
  }
  func.func @transform_1(%arg0: i32, %arg1: i32) -> (i32, i32) {
    %c0_i32 = arith.constant 0 : i32
    %c0_i32_0 = arith.constant 0 : i32
    return %c0_i32, %arg1 : i32, i32
  }
  func.func @transform_2(%arg0: i32, %arg1: i32) -> (i32, i32) {
    %c0_i32 = arith.constant 0 : i32
    %c0_i32_0 = arith.constant 0 : i32
    return %c0_i32, %arg1 : i32, i32
  }
  func.func @transform_3(%arg0: i32, %arg1: i32) -> (i32, i32) {
    %c0_i32 = arith.constant 0 : i32
    return %arg0, %arg1 : i32, i32
  }
}

module attributes {stable_mosaic.version = 11 : i64} {
  func.func @_mm_kernel(%arg0: i32, %arg1: i32, %arg2: memref<128x128xbf16, #tpu.memory_space<vmem>>, %arg3: memref<128x128xbf16, #tpu.memory_space<vmem>>, %arg4: memref<1x128xf32, #tpu.memory_space<vmem>>, %arg5: memref<128x128xbf16, #tpu.memory_space<vmem>>, %arg6: memref<128x128xbf16, #tpu.memory_space<vmem>>, %arg7: memref<1x128xf32, #tpu.memory_space<vmem>>, %arg8: memref<128x128xf32, #tpu.memory_space<vmem>>) attributes {dimension_semantics = [#tpu.dimension_semantics<parallel>, #tpu.dimension_semantics<parallel>], iteration_bounds = array<i64: 1, 1>, scalar_prefetch = 0 : i64, scratch_operands = 0 : i64, tpu.core_type = #tpu.core_type<tc>, window_params = [{transform_indices = @transform_0, window_bounds = array<i64: 128, 128>}, {transform_indices = @transform_1, window_bounds = array<i64: 128, 128>}, {transform_indices = @transform_2, window_bounds = array<i64: 1, 128>}, {transform_indices = @transform_3, window_bounds = array<i64: 128, 128>}, {transform_indices = @transform_4, window_bounds = array<i64: 128, 128>}, {transform_indices = @transform_5, window_bounds = array<i64: 1, 128>}, {transform_indices = @transform_6, window_bounds = array<i64: 128, 128>}]} {
    %c0 = arith.constant 0 : index
    %c0_0 = arith.constant 0 : index
    %0 = vector.load %arg2[%c0, %c0_0] : memref<128x128xbf16, #tpu.memory_space<vmem>>, vector<128x128xbf16>
    %c0_1 = arith.constant 0 : index
    %c0_2 = arith.constant 0 : index
    %1 = vector.load %arg3[%c0_1, %c0_2] : memref<128x128xbf16, #tpu.memory_space<vmem>>, vector<128x128xbf16>
    %cst = arith.constant dense<0.000000e+00> : vector<128x128xf32>
    %2 = tpu.matmul %0, %1, %cst {dimension_numbers = #tpu.dot_dimension_numbers<[1], [0], [0], [1], [0, 0, 1, 1], [], []>} : vector<128x128xbf16>, vector<128x128xbf16>, vector<128x128xf32> -> vector<128x128xf32>
    %c0_3 = arith.constant 0 : index
    %c0_4 = arith.constant 0 : index
    %3 = vector.load %arg4[%c0_3, %c0_4] : memref<1x128xf32, #tpu.memory_space<vmem>>, vector<1x128xf32>
    %4 = vector.broadcast %3 : vector<1x128xf32> to vector<128x128xf32>
    %5 = arith.addf %2, %4 : vector<128x128xf32>
    %c0_5 = arith.constant 0 : index
    %c0_6 = arith.constant 0 : index
    %6 = vector.load %arg5[%c0_5, %c0_6] : memref<128x128xbf16, #tpu.memory_space<vmem>>, vector<128x128xbf16>
    %c0_7 = arith.constant 0 : index
    %c0_8 = arith.constant 0 : index
    %7 = vector.load %arg6[%c0_7, %c0_8] : memref<128x128xbf16, #tpu.memory_space<vmem>>, vector<128x128xbf16>
    %cst_9 = arith.constant dense<0.000000e+00> : vector<128x128xf32>
    %8 = tpu.matmul %6, %7, %cst_9 {dimension_numbers = #tpu.dot_dimension_numbers<[1], [0], [0], [1], [0, 0, 1, 1], [], []>} : vector<128x128xbf16>, vector<128x128xbf16>, vector<128x128xf32> -> vector<128x128xf32>
    %9 = arith.addf %5, %8 : vector<128x128xf32>
    %c0_10 = arith.constant 0 : index
    %c0_11 = arith.constant 0 : index
    %10 = vector.load %arg7[%c0_10, %c0_11] : memref<1x128xf32, #tpu.memory_space<vmem>>, vector<1x128xf32>
    %11 = vector.broadcast %10 : vector<1x128xf32> to vector<128x128xf32>
    %12 = arith.addf %9, %11 : vector<128x128xf32>
    %cst_12 = arith.constant 0.000000e+00 : f32
    %13 = vector.broadcast %cst_12 : f32 to vector<128x128xf32>
    %14 = arith.maximumf %12, %13 : vector<128x128xf32>
    %c0_13 = arith.constant 0 : index
    %c0_14 = arith.constant 0 : index
    %15 = vector.load %arg8[%c0_13, %c0_14] : memref<128x128xf32, #tpu.memory_space<vmem>>, vector<128x128xf32>
    tpu.vector_store %arg8[%c0_13, %c0_14], %14 {strides = array<i32>} : memref<128x128xf32, #tpu.memory_space<vmem>>, vector<128x128xf32>,
    return
  }
  func.func @transform_0(%arg0: i32, %arg1: i32) -> (i32, i32) {
    %c0_i32 = arith.constant 0 : i32
    %c0_i32_0 = arith.constant 0 : i32
    return %arg0, %c0_i32 : i32, i32
  }
  func.func @transform_1(%arg0: i32, %arg1: i32) -> (i32, i32) {
    %c0_i32 = arith.constant 0 : i32
    %c0_i32_0 = arith.constant 0 : i32
    return %c0_i32, %arg1 : i32, i32
  }
  func.func @transform_2(%arg0: i32, %arg1: i32) -> (i32, i32) {
    %c0_i32 = arith.constant 0 : i32
    %c0_i32_0 = arith.constant 0 : i32
    return %c0_i32, %arg1 : i32, i32
  }
  func.func @transform_3(%arg0: i32, %arg1: i32) -> (i32, i32) {
    %c0_i32 = arith.constant 0 : i32
    %c0_i32_0 = arith.constant 0 : i32
    return %arg0, %c0_i32 : i32, i32
  }
  func.func @transform_4(%arg0: i32, %arg1: i32) -> (i32, i32) {
    %c0_i32 = arith.constant 0 : i32
    %c0_i32_0 = arith.constant 0 : i32
    return %c0_i32, %arg1 : i32, i32
  }
  func.func @transform_5(%arg0: i32, %arg1: i32) -> (i32, i32) {
    %c0_i32 = arith.constant 0 : i32
    %c0_i32_0 = arith.constant 0 : i32
    return %c0_i32, %arg1 : i32, i32
  }
  func.func @transform_6(%arg0: i32, %arg1: i32) -> (i32, i32) {
    %c0_i32 = arith.constant 0 : i32
    return %arg0, %arg1 : i32, i32
  }
}

module attributes {stable_mosaic.version = 11 : i64} {
  func.func @_conv3x3_kernel(%arg0: i32, %arg1: i32, %arg2: memref<4x9x9x128xbf16, #tpu.memory_space<vmem>>, %arg3: memref<9x128x128xbf16, #tpu.memory_space<vmem>>, %arg4: memref<1x128xf32, #tpu.memory_space<vmem>>, %arg5: memref<1x8x8x128xbf16, #tpu.memory_space<vmem>>) attributes {dimension_semantics = [#tpu.dimension_semantics<parallel>, #tpu.dimension_semantics<parallel>], iteration_bounds = array<i64: 2, 1>, scalar_prefetch = 0 : i64, scratch_operands = 0 : i64, tpu.core_type = #tpu.core_type<tc>, window_params = [{transform_indices = @transform_0, window_bounds = array<i64: 4, 9, 9, 128>}, {transform_indices = @transform_1, window_bounds = array<i64: 9, 128, 128>}, {transform_indices = @transform_2, window_bounds = array<i64: 1, 128>}, {transform_indices = @transform_3, window_bounds = array<i64: 1, 8, 8, 128>}]} {
    %cst = arith.constant 0.000000e+00 : f32
    %0 = vector.broadcast %cst : f32 to vector<64x128xf32>
    %c0 = arith.constant 0 : index
    %c0_0 = arith.constant 0 : index
    %c0_1 = arith.constant 0 : index
    %c0_2 = arith.constant 0 : index
    %1 = vector.load %arg2[%c0, %c0_0, %c0_1, %c0_2] : memref<4x9x9x128xbf16, #tpu.memory_space<vmem>>, vector<1x8x8x128xbf16>
    %2 = vector.shape_cast %1 : vector<1x8x8x128xbf16> to vector<8x8x128xbf16>
    %3 = vector.shape_cast %2 : vector<8x8x128xbf16> to vector<64x128xbf16>
    %c0_3 = arith.constant 0 : index
    %c0_4 = arith.constant 0 : index
    %c0_5 = arith.constant 0 : index
    %4 = vector.load %arg3[%c0_3, %c0_4, %c0_5] : memref<9x128x128xbf16, #tpu.memory_space<vmem>>, vector<1x128x128xbf16>
    %5 = vector.shape_cast %4 : vector<1x128x128xbf16> to vector<128x128xbf16>
    %cst_6 = arith.constant dense<0.000000e+00> : vector<64x128xf32>
    %6 = tpu.matmul %3, %5, %cst_6 {dimension_numbers = #tpu.dot_dimension_numbers<[1], [0], [0], [1], [0, 0, 1, 1], [], []>} : vector<64x128xbf16>, vector<128x128xbf16>, vector<64x128xf32> -> vector<64x128xf32>
    %7 = arith.addf %0, %6 : vector<64x128xf32>
    %c1 = arith.constant 1 : index
    %c0_7 = arith.constant 0 : index
    %c0_8 = arith.constant 0 : index
    %c0_9 = arith.constant 0 : index
    %8 = vector.load %arg2[%c1, %c0_7, %c0_8, %c0_9] : memref<4x9x9x128xbf16, #tpu.memory_space<vmem>>, vector<1x8x8x128xbf16>
    %9 = vector.shape_cast %8 : vector<1x8x8x128xbf16> to vector<8x8x128xbf16>
    %10 = vector.shape_cast %9 : vector<8x8x128xbf16> to vector<64x128xbf16>
    %c1_10 = arith.constant 1 : index
    %c0_11 = arith.constant 0 : index
    %c0_12 = arith.constant 0 : index
    %11 = vector.load %arg3[%c1_10, %c0_11, %c0_12] : memref<9x128x128xbf16, #tpu.memory_space<vmem>>, vector<1x128x128xbf16>
    %12 = vector.shape_cast %11 : vector<1x128x128xbf16> to vector<128x128xbf16>
    %cst_13 = arith.constant dense<0.000000e+00> : vector<64x128xf32>
    %13 = tpu.matmul %10, %12, %cst_13 {dimension_numbers = #tpu.dot_dimension_numbers<[1], [0], [0], [1], [0, 0, 1, 1], [], []>} : vector<64x128xbf16>, vector<128x128xbf16>, vector<64x128xf32> -> vector<64x128xf32>
    %14 = arith.addf %7, %13 : vector<64x128xf32>
    %c0_14 = arith.constant 0 : index
    %c0_15 = arith.constant 0 : index
    %c1_16 = arith.constant 1 : index
    %c0_17 = arith.constant 0 : index
    %15 = vector.load %arg2[%c0_14, %c0_15, %c1_16, %c0_17] : memref<4x9x9x128xbf16, #tpu.memory_space<vmem>>, vector<1x8x8x128xbf16>
    %16 = vector.shape_cast %15 : vector<1x8x8x128xbf16> to vector<8x8x128xbf16>
    %17 = vector.shape_cast %16 : vector<8x8x128xbf16> to vector<64x128xbf16>
    %c2 = arith.constant 2 : index
    %c0_18 = arith.constant 0 : index
    %c0_19 = arith.constant 0 : index
    %18 = vector.load %arg3[%c2, %c0_18, %c0_19] : memref<9x128x128xbf16, #tpu.memory_space<vmem>>, vector<1x128x128xbf16>
    %19 = vector.shape_cast %18 : vector<1x128x128xbf16> to vector<128x128xbf16>
    %cst_20 = arith.constant dense<0.000000e+00> : vector<64x128xf32>
    %20 = tpu.matmul %17, %19, %cst_20 {dimension_numbers = #tpu.dot_dimension_numbers<[1], [0], [0], [1], [0, 0, 1, 1], [], []>} : vector<64x128xbf16>, vector<128x128xbf16>, vector<64x128xf32> -> vector<64x128xf32>
    %21 = arith.addf %14, %20 : vector<64x128xf32>
    %c2_21 = arith.constant 2 : index
    %c0_22 = arith.constant 0 : index
    %c0_23 = arith.constant 0 : index
    %c0_24 = arith.constant 0 : index
    %22 = vector.load %arg2[%c2_21, %c0_22, %c0_23, %c0_24] : memref<4x9x9x128xbf16, #tpu.memory_space<vmem>>, vector<1x8x8x128xbf16>
    %23 = vector.shape_cast %22 : vector<1x8x8x128xbf16> to vector<8x8x128xbf16>
    %24 = vector.shape_cast %23 : vector<8x8x128xbf16> to vector<64x128xbf16>
    %c3 = arith.constant 3 : index
    %c0_25 = arith.constant 0 : index
    %c0_26 = arith.constant 0 : index
    %25 = vector.load %arg3[%c3, %c0_25, %c0_26] : memref<9x128x128xbf16, #tpu.memory_space<vmem>>, vector<1x128x128xbf16>
    %26 = vector.shape_cast %25 : vector<1x128x128xbf16> to vector<128x128xbf16>
    %cst_27 = arith.constant dense<0.000000e+00> : vector<64x128xf32>
    %27 = tpu.matmul %24, %26, %cst_27 {dimension_numbers = #tpu.dot_dimension_numbers<[1], [0], [0], [1], [0, 0, 1, 1], [], []>} : vector<64x128xbf16>, vector<128x128xbf16>, vector<64x128xf32> -> vector<64x128xf32>
    %28 = arith.addf %21, %27 : vector<64x128xf32>
    %c3_28 = arith.constant 3 : index
    %c0_29 = arith.constant 0 : index
    %c0_30 = arith.constant 0 : index
    %c0_31 = arith.constant 0 : index
    %29 = vector.load %arg2[%c3_28, %c0_29, %c0_30, %c0_31] : memref<4x9x9x128xbf16, #tpu.memory_space<vmem>>, vector<1x8x8x128xbf16>
    %30 = vector.shape_cast %29 : vector<1x8x8x128xbf16> to vector<8x8x128xbf16>
    %31 = vector.shape_cast %30 : vector<8x8x128xbf16> to vector<64x128xbf16>
    %c4 = arith.constant 4 : index
    %c0_32 = arith.constant 0 : index
    %c0_33 = arith.constant 0 : index
    %32 = vector.load %arg3[%c4, %c0_32, %c0_33] : memref<9x128x128xbf16, #tpu.memory_space<vmem>>, vector<1x128x128xbf16>
    %33 = vector.shape_cast %32 : vector<1x128x128xbf16> to vector<128x128xbf16>
    %cst_34 = arith.constant dense<0.000000e+00> : vector<64x128xf32>
    %34 = tpu.matmul %31, %33, %cst_34 {dimension_numbers = #tpu.dot_dimension_numbers<[1], [0], [0], [1], [0, 0, 1, 1], [], []>} : vector<64x128xbf16>, vector<128x128xbf16>, vector<64x128xf32> -> vector<64x128xf32>
    %35 = arith.addf %28, %34 : vector<64x128xf32>
    %c2_35 = arith.constant 2 : index
    %c0_36 = arith.constant 0 : index
    %c1_37 = arith.constant 1 : index
    %c0_38 = arith.constant 0 : index
    %36 = vector.load %arg2[%c2_35, %c0_36, %c1_37, %c0_38] : memref<4x9x9x128xbf16, #tpu.memory_space<vmem>>, vector<1x8x8x128xbf16>
    %37 = vector.shape_cast %36 : vector<1x8x8x128xbf16> to vector<8x8x128xbf16>
    %38 = vector.shape_cast %37 : vector<8x8x128xbf16> to vector<64x128xbf16>
    %c5 = arith.constant 5 : index
    %c0_39 = arith.constant 0 : index
    %c0_40 = arith.constant 0 : index
    %39 = vector.load %arg3[%c5, %c0_39, %c0_40] : memref<9x128x128xbf16, #tpu.memory_space<vmem>>, vector<1x128x128xbf16>
    %40 = vector.shape_cast %39 : vector<1x128x128xbf16> to vector<128x128xbf16>
    %cst_41 = arith.constant dense<0.000000e+00> : vector<64x128xf32>
    %41 = tpu.matmul %38, %40, %cst_41 {dimension_numbers = #tpu.dot_dimension_numbers<[1], [0], [0], [1], [0, 0, 1, 1], [], []>} : vector<64x128xbf16>, vector<128x128xbf16>, vector<64x128xf32> -> vector<64x128xf32>
    %42 = arith.addf %35, %41 : vector<64x128xf32>
    %c0_42 = arith.constant 0 : index
    %c1_43 = arith.constant 1 : index
    %c0_44 = arith.constant 0 : index
    %c0_45 = arith.constant 0 : index
    %43 = vector.load %arg2[%c0_42, %c1_43, %c0_44, %c0_45] : memref<4x9x9x128xbf16, #tpu.memory_space<vmem>>, vector<1x8x8x128xbf16>
    %44 = vector.shape_cast %43 : vector<1x8x8x128xbf16> to vector<8x8x128xbf16>
    %45 = vector.shape_cast %44 : vector<8x8x128xbf16> to vector<64x128xbf16>
    %c6 = arith.constant 6 : index
    %c0_46 = arith.constant 0 : index
    %c0_47 = arith.constant 0 : index
    %46 = vector.load %arg3[%c6, %c0_46, %c0_47] : memref<9x128x128xbf16, #tpu.memory_space<vmem>>, vector<1x128x128xbf16>
    %47 = vector.shape_cast %46 : vector<1x128x128xbf16> to vector<128x128xbf16>
    %cst_48 = arith.constant dense<0.000000e+00> : vector<64x128xf32>
    %48 = tpu.matmul %45, %47, %cst_48 {dimension_numbers = #tpu.dot_dimension_numbers<[1], [0], [0], [1], [0, 0, 1, 1], [], []>} : vector<64x128xbf16>, vector<128x128xbf16>, vector<64x128xf32> -> vector<64x128xf32>
    %49 = arith.addf %42, %48 : vector<64x128xf32>
    %c1_49 = arith.constant 1 : index
    %c1_50 = arith.constant 1 : index
    %c0_51 = arith.constant 0 : index
    %c0_52 = arith.constant 0 : index
    %50 = vector.load %arg2[%c1_49, %c1_50, %c0_51, %c0_52] : memref<4x9x9x128xbf16, #tpu.memory_space<vmem>>, vector<1x8x8x128xbf16>
    %51 = vector.shape_cast %50 : vector<1x8x8x128xbf16> to vector<8x8x128xbf16>
    %52 = vector.shape_cast %51 : vector<8x8x128xbf16> to vector<64x128xbf16>
    %c7 = arith.constant 7 : index
    %c0_53 = arith.constant 0 : index
    %c0_54 = arith.constant 0 : index
    %53 = vector.load %arg3[%c7, %c0_53, %c0_54] : memref<9x128x128xbf16, #tpu.memory_space<vmem>>, vector<1x128x128xbf16>
    %54 = vector.shape_cast %53 : vector<1x128x128xbf16> to vector<128x128xbf16>
    %cst_55 = arith.constant dense<0.000000e+00> : vector<64x128xf32>
    %55 = tpu.matmul %52, %54, %cst_55 {dimension_numbers = #tpu.dot_dimension_numbers<[1], [0], [0], [1], [0, 0, 1, 1], [], []>} : vector<64x128xbf16>, vector<128x128xbf16>, vector<64x128xf32> -> vector<64x128xf32>
    %56 = arith.addf %49, %55 : vector<64x128xf32>
    %c0_56 = arith.constant 0 : index
    %c1_57 = arith.constant 1 : index
    %c1_58 = arith.constant 1 : index
    %c0_59 = arith.constant 0 : index
    %57 = vector.load %arg2[%c0_56, %c1_57, %c1_58, %c0_59] : memref<4x9x9x128xbf16, #tpu.memory_space<vmem>>, vector<1x8x8x128xbf16>
    %58 = vector.shape_cast %57 : vector<1x8x8x128xbf16> to vector<8x8x128xbf16>
    %59 = vector.shape_cast %58 : vector<8x8x128xbf16> to vector<64x128xbf16>
    %c8 = arith.constant 8 : index
    %c0_60 = arith.constant 0 : index
    %c0_61 = arith.constant 0 : index
    %60 = vector.load %arg3[%c8, %c0_60, %c0_61] : memref<9x128x128xbf16, #tpu.memory_space<vmem>>, vector<1x128x128xbf16>
    %61 = vector.shape_cast %60 : vector<1x128x128xbf16> to vector<128x128xbf16>
    %cst_62 = arith.constant dense<0.000000e+00> : vector<64x128xf32>
    %62 = tpu.matmul %59, %61, %cst_62 {dimension_numbers = #tpu.dot_dimension_numbers<[1], [0], [0], [1], [0, 0, 1, 1], [], []>} : vector<64x128xbf16>, vector<128x128xbf16>, vector<64x128xf32> -> vector<64x128xf32>
    %63 = arith.addf %56, %62 : vector<64x128xf32>
    %c0_63 = arith.constant 0 : index
    %c0_64 = arith.constant 0 : index
    %64 = vector.load %arg4[%c0_63, %c0_64] : memref<1x128xf32, #tpu.memory_space<vmem>>, vector<1x128xf32>
    %65 = vector.broadcast %64 : vector<1x128xf32> to vector<64x128xf32>
    %66 = arith.addf %63, %65 : vector<64x128xf32>
    %cst_65 = arith.constant 0.000000e+00 : f32
    %67 = vector.broadcast %cst_65 : f32 to vector<64x128xf32>
    %68 = arith.maximumf %66, %67 : vector<64x128xf32>
    %69 = vector.shape_cast %68 : vector<64x128xf32> to vector<1x8x8x128xf32>
    %70 = arith.truncf %69 : vector<1x8x8x128xf32> to vector<1x8x8x128xbf16>
    %c0_66 = arith.constant 0 : index
    %c0_67 = arith.constant 0 : index
    %c0_68 = arith.constant 0 : index
    %c0_69 = arith.constant 0 : index
    %71 = vector.load %arg5[%c0_66, %c0_67, %c0_68, %c0_69] : memref<1x8x8x128xbf16, #tpu.memory_space<vmem>>, vector<1x8x8x128xbf16>
    tpu.vector_store %arg5[%c0_66, %c0_67, %c0_68, %c0_69], %70 {strides = array<i32>} : memref<1x8x8x128xbf16, #tpu.memory_space<vmem>>, vector<1x8x8x128xbf16>,
    return
  }
  func.func @transform_0(%arg0: i32, %arg1: i32) -> (i32, i32, i32, i32) {
    %c0_i32 = arith.constant 0 : i32
    %c0_i32_0 = arith.constant 0 : i32
    %c0_i32_1 = arith.constant 0 : i32
    %c0_i32_2 = arith.constant 0 : i32
    return %arg0, %c0_i32, %c0_i32_0, %c0_i32_1 : i32, i32, i32, i32
  }
  func.func @transform_1(%arg0: i32, %arg1: i32) -> (i32, i32, i32) {
    %c0_i32 = arith.constant 0 : i32
    %c0_i32_0 = arith.constant 0 : i32
    %c0_i32_1 = arith.constant 0 : i32
    return %c0_i32, %c0_i32_0, %arg1 : i32, i32, i32
  }
  func.func @transform_2(%arg0: i32, %arg1: i32) -> (i32, i32) {
    %c0_i32 = arith.constant 0 : i32
    %c0_i32_0 = arith.constant 0 : i32
    return %c0_i32, %arg1 : i32, i32
  }
  func.func @transform_3(%arg0: i32, %arg1: i32) -> (i32, i32, i32, i32) {
    %c0_i32 = arith.constant 0 : i32
    %c0_i32_0 = arith.constant 0 : i32
    %c0_i32_1 = arith.constant 0 : i32
    return %arg0, %c0_i32, %c0_i32_0, %arg1 : i32, i32, i32, i32
  }
}

</mosaic_0001>

<llo_original>
// kernel: bottleneck_forward.3
$region0: #{bottleneck_forward.3}
  #allocation0 [shape = 'u32[]', space=smem, size = 0x4, offset = 0x4, fixed_abs, tag = 'smem constant byte address 0x4 - core index']
  #allocation1 [shape = 'u32[72,128]{1,0:T(1,128)}', space=vmem, size = 0x9000, scoped, tag = 'internal scratch']
  %s0 = inlined_call_operand.vmem [shape: bf16[512,128], index: 0, kind: input, shape index: {}]
  %s1 = inlined_call_operand.vmem [shape: bf16[128,128], index: 1, kind: input, shape index: {}]
  %s2 = inlined_call_operand.vmem [shape: f32[1,128], index: 2, kind: input, shape index: {}]
  %s3 = inlined_call_operand.vmem [shape: bf16[512,128], index: 3, kind: output, shape index: {}]
  %s4 = sld [smem:[#allocation0]]
  $region45: #{bottleneck_forward.3} parent=0
    _
  %s6 = ssub.s32 1, %s4
  %s7 = scalar_select 0, %s6, %s4
  loop: start=0, step=1, limit=4
  $region2: #{bottleneck_forward.3} parent=0 // loop_pre_header
    _
  $region3: #{bottleneck_forward.3} parent=0 // loop_header
    %s9 = sphi 0, %s13
    %p10 = scmp.ge.s32.totalorder %s9, 4
    %s16 = sphi 0, %s28
    %s17 = sphi 0, %s24
    %s18 = sphi 0, %s16
    %s19 = sphi 0, %s17
    %s20 = sphi 0, %s18
    %s21 = sphi 0, %s19
    %s31 = sphi 0, %s33
    %s34 = sphi 0, %s31
    %s35 = sphi 0, %s34
    %s51 = sphi 0, %s35
    %s57 = sphi 0, %s59
    %s60 = sphi 0, %s57
    %s61 = sphi 0, %s60
    %s77 = sphi 0, %s61
    %s83 = sphi 0, %s85
    %s86 = sphi 0, %s83
    %s87 = sphi 0, %s86
    %s103 = sphi 0, %s87
    %s111 = sphi 0, %s113
    %s114 = sphi 0, %s111
    %s115 = sphi 0, %s114
    %s131 = sphi 0, %s115
  $region4: #{bottleneck_forward.3} parent=0 // loop_header_branch
    %12 = sbr.rel (%p10) target = $region8
  $region5: #{bottleneck_forward.3} parent=0 // loop_body
    %s14 = ssub.s32 %s9, 1
    %s15 = ssub.s32 %s9, 2
    %s22 = sadd.s32 1, %s17
    %p23 = scmp.ge.s32.totalorder %s22, 1
    %s24 = scalar_select %p23, 0, %s22
    %s25 = sadd.s32 1, %s16
    %s26 = scalar_select %p23, %s25, %s16
    %p27 = scmp.ge.s32.totalorder %s26, 2
    %s28 = scalar_select %p27, 0, %s26
    %s29 = ssub.s32 %s16, %s28
    %p30 = scmp.eq.s32.totalorder %s29, 0
    %s32 = sadd.s32 %s31, 1
    %s33 = scalar_select %p30, %s31, %s32
    %p36 = pneg %p30
    %p37 = scmp.eq.s32.totalorder %s9, 1
    %p38 = por %p36, %p37
    %p39 = scmp.ne.s32.totalorder %s31, %s34
    %p40 = scmp.eq.s32.totalorder %s9, 0
    %p41 = por %p39, %p40
    %p42 = scmp.ne.s32.totalorder %s31, %s34
    %p43 = scmp.eq.s32.totalorder %s14, 1
    %p44 = por %p42, %p43
    %p45 = scmp.ne.s32.totalorder %s34, %s35
    %p46 = scmp.eq.s32.totalorder %s14, 0
    %p47 = por %p45, %p46
    %p48 = scmp.ne.s32.totalorder %s34, %s35
    %p49 = scmp.eq.s32.totalorder %s15, 1
    %p50 = por %p48, %p49
    %p52 = scmp.ne.s32.totalorder %s35, %s51
    %p53 = scmp.eq.s32.totalorder %s15, 0
    %p54 = por %p52, %p53
    %s55 = ssub.s32 %s17, %s24
    %p56 = scmp.eq.s32.totalorder %s55, 0
    %s58 = sadd.s32 %s57, 1
    %s59 = scalar_select %p56, %s57, %s58
    %p62 = pneg %p56
    %p63 = scmp.eq.s32.totalorder %s9, 1
    %p64 = por %p62, %p63
    %p65 = scmp.ne.s32.totalorder %s57, %s60
    %p66 = scmp.eq.s32.totalorder %s9, 0
    %p67 = por %p65, %p66
    %p68 = scmp.ne.s32.totalorder %s57, %s60
    %p69 = scmp.eq.s32.totalorder %s14, 1
    %p70 = por %p68, %p69
    %p71 = scmp.ne.s32.totalorder %s60, %s61
    %p72 = scmp.eq.s32.totalorder %s14, 0
    %p73 = por %p71, %p72
    %p74 = scmp.ne.s32.totalorder %s60, %s61
    %p75 = scmp.eq.s32.totalorder %s15, 1
    %p76 = por %p74, %p75
    %p78 = scmp.ne.s32.totalorder %s61, %s77
    %p79 = scmp.eq.s32.totalorder %s15, 0
    %p80 = por %p78, %p79
    %s81 = ssub.s32 %s17, %s24
    %p82 = scmp.eq.s32.totalorder %s81, 0
    %s84 = sadd.s32 %s83, 1
    %s85 = scalar_select %p82, %s83, %s84
    %p88 = pneg %p82
    %p89 = scmp.eq.s32.totalorder %s9, 1
    %p90 = por %p88, %p89
    %p91 = scmp.ne.s32.totalorder %s83, %s86
    %p92 = scmp.eq.s32.totalorder %s9, 0
    %p93 = por %p91, %p92
    %p94 = scmp.ne.s32.totalorder %s83, %s86
    %p95 = scmp.eq.s32.totalorder %s14, 1
    %p96 = por %p94, %p95
    %p97 = scmp.ne.s32.totalorder %s86, %s87
    %p98 = scmp.eq.s32.totalorder %s14, 0
    %p99 = por %p97, %p98
    %p100 = scmp.ne.s32.totalorder %s86, %s87
    %p101 = scmp.eq.s32.totalorder %s15, 1
    %p102 = por %p100, %p101
    %p104 = scmp.ne.s32.totalorder %s87, %s103
    %p105 = scmp.eq.s32.totalorder %s15, 0
    %p106 = por %p104, %p105
    %s107 = ssub.s32 %s16, %s28
    %s108 = ssub.s32 %s17, %s24
    %s109 = sor.u32 %s107, %s108
    %p110 = scmp.eq.s32.totalorder %s109, 0
    %s112 = sadd.s32 %s111, 1
    %s113 = scalar_select %p110, %s111, %s112
    %p116 = pneg %p110
    %p117 = scmp.eq.s32.totalorder %s9, 1
    %p118 = por %p116, %p117
    %p119 = scmp.ne.s32.totalorder %s111, %s114
    %p120 = scmp.eq.s32.totalorder %s9, 0
    %p121 = por %p119, %p120
    %p122 = scmp.ne.s32.totalorder %s111, %s114
    %p123 = scmp.eq.s32.totalorder %s14, 1
    %p124 = por %p122, %p123
    %p125 = scmp.ne.s32.totalorder %s114, %s115
    %p126 = scmp.eq.s32.totalorder %s14, 0
    %p127 = por %p125, %p126
    %p128 = scmp.ne.s32.totalorder %s114, %s115
    %p129 = scmp.eq.s32.totalorder %s15, 1
    %p130 = por %p128, %p129
    %p132 = scmp.ne.s32.totalorder %s115, %s131
    %p133 = scmp.eq.s32.totalorder %s15, 0
    %p134 = por %p132, %p133
    %p135 = scmp.le.s32.totalorder 1, %s9
    %p136 = scmp.lt.s32.totalorder %s9, 3
    %p137 = pnand %p135, %p136
    %p138 = pneg %p137
    // Predicated region
    $region9: #{bottleneck_forward.3} parent=5 // pred_check
      _
    $region10: #{bottleneck_forward.3} parent=5 // pred_check_branch
      %140 = sbr.rel (%p137) target = $region12
    $region11: #{bottleneck_forward.3} parent=5 // pred_region
      %s141 = ssub.s32 %s9, 1
      // Predicated region
      $region13: #{bottleneck_forward.3} parent=11 // pred_check
        %p142 = pneg %p73
      $region14: #{bottleneck_forward.3} parent=11 // pred_check_branch
        %144 = sbr.rel (%p142) target = $region16
      $region15: #{bottleneck_forward.3} parent=11 // pred_region
        %p145 = scmp.lt.s32.totalorder %s19, 0
        %s146 = scalar_select %p145, %s19, 0
        %s147 = smul.addr %s146, 4
        %s148 = scalar_lea.vmem %s1, %s147
      $region16: #{bottleneck_forward.3} parent=11 // pred_fallthru
        _
      // Predicated region
      $region17: #{bottleneck_forward.3} parent=11 // pred_check
        %p149 = pneg %p99
      $region18: #{bottleneck_forward.3} parent=11 // pred_check_branch
        %151 = sbr.rel (%p149) target = $region20
      $region19: #{bottleneck_forward.3} parent=11 // pred_region
        %p152 = scmp.lt.s32.totalorder %s19, 0
        %s153 = scalar_select %p152, %s19, 0
        %s154 = scalar_lea.vmem %s2, %s153
      $region20: #{bottleneck_forward.3} parent=11 // pred_fallthru
        _
    $region12: #{bottleneck_forward.3} parent=5 // pred_fallthru
      _
    %p155 = scmp.lt.s32.totalorder %s9, 2
    // Predicated region
    $region21: #{bottleneck_forward.3} parent=5 // pred_check
      %p156 = pneg %p155
    $region22: #{bottleneck_forward.3} parent=5 // pred_check_branch
      %158 = sbr.rel (%p156) target = $region24
    $region23: #{bottleneck_forward.3} parent=5 // pred_region
      // Predicated region
      $region25: #{bottleneck_forward.3} parent=23 // pred_check
        %p159 = pneg %p41
      $region26: #{bottleneck_forward.3} parent=23 // pred_check_branch
        %161 = sbr.rel (%p159) target = $region28
      $region27: #{bottleneck_forward.3} parent=23 // pred_region
        %s162 = smul.u32 32, %s16
        %p163 = scmp.lt.s32.totalorder %s162, 63
        %s164 = scalar_select %p163, %s162, 63
        %s165 = smul.addr %s164, 4
        %s166 = scalar_lea.vmem %s0, %s165
        %s167 = smul.u32 32, %s16
      $region28: #{bottleneck_forward.3} parent=23 // pred_fallthru
        _
    $region24: #{bottleneck_forward.3} parent=5 // pred_fallthru
      _
    %p168 = scmp.le.s32.totalorder 1, %s9
    %p169 = scmp.lt.s32.totalorder %s9, 3
    %p170 = pnand %p168, %p169
    %p171 = pneg %p170
    // Predicated region
    $region29: #{bottleneck_forward.3} parent=5 // pred_check
      _
    $region30: #{bottleneck_forward.3} parent=5 // pred_check_branch
      %173 = sbr.rel (%p170) target = $region32
    $region31: #{bottleneck_forward.3} parent=5 // pred_region
      %s174 = ssub.s32 %s9, 1
      %s175 = smul.u32 32, %s18
      %p176 = scmp.lt.s32.totalorder %s175, 63
      %s177 = scalar_select %p176, %s175, 63
      %s178 = smul.addr %s177, 4
      %s179 = scalar_lea.vmem %s0, %s178
      %p180 = pneg %p47
      %p181 = pneg %p44
      %p182 = scmp.lt.s32.totalorder %s19, 0
      %s183 = scalar_select %p182, %s19, 0
      %s184 = smul.addr %s183, 4
      %s185 = scalar_lea.vmem %s1, %s184
      %p186 = pneg %p73
      %p187 = pneg %p70
      %p188 = scmp.lt.s32.totalorder %s19, 0
      %s189 = scalar_select %p188, %s19, 0
      %s190 = scalar_lea.vmem %s2, %s189
      %p191 = pneg %p99
      %p192 = pneg %p96
      %p193 = pneg %p127
      %p194 = pneg %p124
      %s195 = smul.u32 32, %s18
      %p196 = scmp.lt.s32.totalorder %s195, 63
      %s197 = scalar_select %p196, %s195, 63
      %p198 = scmp.lt.s32.totalorder %s19, 0
      %s199 = scalar_select %p198, %s19, 0
      %s200 = sadd.s32 %s199, %s197
      %s201 = smul.addr %s200, 4
      %s202 = scalar_lea.vmem %s3, %s201
      %s203 = smul.u32 32, %s18
      %p204 = scmp.lt.s32.totalorder %s203, 63
      %s205 = scalar_select %p204, %s203, 63
      %s206 = smul.addr %s205, 4
      %s207 = scalar_lea.vmem %s0, %s206
      %s208 = smul.u32 32, %s18
      %p209 = scmp.lt.s32.totalorder %s19, 0
      %s210 = scalar_select %p209, %s19, 0
      %s211 = smul.addr %s210, 4
      %s212 = scalar_lea.vmem %s1, %s211
      %p213 = scmp.lt.s32.totalorder %s19, 0
      %s214 = scalar_select %p213, %s19, 0
      %s215 = scalar_lea.vmem %s2, %s214
      %s216 = smul.u32 32, %s18
      %p217 = scmp.lt.s32.totalorder %s216, 63
      %s218 = scalar_select %p217, %s216, 63
      %p219 = scmp.lt.s32.totalorder %s19, 0
      %s220 = scalar_select %p219, %s19, 0
      %s221 = sadd.s32 %s220, %s218
      %s222 = smul.addr %s221, 4
      %s223 = scalar_lea.vmem %s3, %s222
      %s224 = smul.u32 32, %s18
      %v225 = vld [vmem:[%s207] sm:$0xf]
      %v226 = vld [vmem:[%s207 + $0x4] sm:$0xf]
      %v227 = vld [vmem:[%s207 + $0x8] sm:$0xf]
      %v228 = vld [vmem:[%s207 + $0xc] sm:$0xf]
      %v229 = vld [vmem:[%s207 + $0x10] sm:$0xf]
      %v230 = vld [vmem:[%s207 + $0x14] sm:$0xf]
      %v231 = vld [vmem:[%s207 + $0x18] sm:$0xf]
      %v232 = vld [vmem:[%s207 + $0x1c] sm:$0xf]
      %v233 = vld [vmem:[%s207 + $0x20] sm:$0xf]
      %v234 = vld [vmem:[%s207 + $0x24] sm:$0xf]
      %v235 = vld [vmem:[%s207 + $0x28] sm:$0xf]
      %v236 = vld [vmem:[%s207 + $0x2c] sm:$0xf]
      %v237 = vld [vmem:[%s207 + $0x30] sm:$0xf]
      %v238 = vld [vmem:[%s207 + $0x34] sm:$0xf]
      %v239 = vld [vmem:[%s207 + $0x38] sm:$0xf]
      %v240 = vld [vmem:[%s207 + $0x3c] sm:$0xf]
      %v241 = vld [vmem:[%s207 + $0x40] sm:$0xf]
      %v242 = vld [vmem:[%s207 + $0x44] sm:$0xf]
      %v243 = vld [vmem:[%s207 + $0x48] sm:$0xf]
      %v244 = vld [vmem:[%s207 + $0x4c] sm:$0xf]
      %v245 = vld [vmem:[%s207 + $0x50] sm:$0xf]
      %v246 = vld [vmem:[%s207 + $0x54] sm:$0xf]
      %v247 = vld [vmem:[%s207 + $0x58] sm:$0xf]
      %v248 = vld [vmem:[%s207 + $0x5c] sm:$0xf]
      %v249 = vld [vmem:[%s207 + $0x60] sm:$0xf]
      %v250 = vld [vmem:[%s207 + $0x64] sm:$0xf]
      %v251 = vld [vmem:[%s207 + $0x68] sm:$0xf]
      %v252 = vld [vmem:[%s207 + $0x6c] sm:$0xf]
      %v253 = vld [vmem:[%s207 + $0x70] sm:$0xf]
      %v254 = vld [vmem:[%s207 + $0x74] sm:$0xf]
      %v255 = vld [vmem:[%s207 + $0x78] sm:$0xf]
      %v256 = vld [vmem:[%s207 + $0x7c] sm:$0xf]
      %v257 = vld [vmem:[%s212] sm:$0xf]
      %v258 = vld [vmem:[%s212 + $0x4] sm:$0xf]
      %v259 = vld [vmem:[%s212 + $0x8] sm:$0xf]
      %v260 = vld [vmem:[%s212 + $0xc] sm:$0xf]
      %v261 = vld [vmem:[%s212 + $0x10] sm:$0xf]
      %v262 = vld [vmem:[%s212 + $0x14] sm:$0xf]
      %v263 = vld [vmem:[%s212 + $0x18] sm:$0xf]
      %v264 = vld [vmem:[%s212 + $0x1c] sm:$0xf]
      %v265 = vld [vmem:[%s212 + $0x20] sm:$0xf]
      %v266 = vld [vmem:[%s212 + $0x24] sm:$0xf]
      %v267 = vld [vmem:[%s212 + $0x28] sm:$0xf]
      %v268 = vld [vmem:[%s212 + $0x2c] sm:$0xf]
      %v269 = vld [vmem:[%s212 + $0x30] sm:$0xf]
      %v270 = vld [vmem:[%s212 + $0x34] sm:$0xf]
      %v271 = vld [vmem:[%s212 + $0x38] sm:$0xf]
      %v272 = vld [vmem:[%s212 + $0x3c] sm:$0xf]
      %v273 = vld [vmem:[%s215] sm:$0x1]
      %v275 = vperm.slane %v273, 0
      %v309 = vunpack.c.l.b16 %v225
      %v310 = vunpack.c.l.b16 %v226
      %v311 = vunpack.c.l.b16 %v227
      %v312 = vunpack.c.l.b16 %v228
      %v313 = vunpack.c.l.b16 %v229
      %v314 = vunpack.c.l.b16 %v230
      %v315 = vunpack.c.l.b16 %v231
      %v316 = vunpack.c.l.b16 %v232
      %v317 = vunpack.c.l.b16 %v233
      %v318 = vunpack.c.l.b16 %v234
      %v319 = vunpack.c.l.b16 %v235
      %v320 = vunpack.c.l.b16 %v236
      %v321 = vunpack.c.l.b16 %v237
      %v322 = vunpack.c.l.b16 %v238
      %v323 = vunpack.c.l.b16 %v239
      %v324 = vunpack.c.l.b16 %v240
      %v325 = vunpack.c.l.b16 %v241
      %v326 = vunpack.c.l.b16 %v242
      %v327 = vunpack.c.l.b16 %v243
      %v328 = vunpack.c.l.b16 %v244
      %v329 = vunpack.c.l.b16 %v245
      %v330 = vunpack.c.l.b16 %v246
      %v331 = vunpack.c.l.b16 %v247
      %v332 = vunpack.c.l.b16 %v248
      %v333 = vunpack.c.l.b16 %v249
      %v334 = vunpack.c.l.b16 %v250
      %v335 = vunpack.c.l.b16 %v251
      %v336 = vunpack.c.l.b16 %v252
      %v337 = vunpack.c.l.b16 %v253
      %v338 = vunpack.c.l.b16 %v254
      %v339 = vunpack.c.l.b16 %v255
      %v340 = vunpack.c.l.b16 %v256
      %v341 = vpack.c.b16 %v310, %v309
      %v342 = vpack.c.b16 %v312, %v311
      %v343 = vpack.c.b16 %v314, %v313
      %v344 = vpack.c.b16 %v316, %v315
      %v345 = vpack.c.b16 %v318, %v317
      %v346 = vpack.c.b16 %v320, %v319
      %v347 = vpack.c.b16 %v322, %v321
      %v348 = vpack.c.b16 %v324, %v323
      %v349 = vpack.c.b16 %v326, %v325
      %v350 = vpack.c.b16 %v328, %v327
      %v351 = vpack.c.b16 %v330, %v329
      %v352 = vpack.c.b16 %v332, %v331
      %v353 = vpack.c.b16 %v334, %v333
      %v354 = vpack.c.b16 %v336, %v335
      %v355 = vpack.c.b16 %v338, %v337
      %v356 = vpack.c.b16 %v340, %v339
      %v389 = vunpack.c.l.b16 %v257
      %v390 = vunpack.c.l.b16 %v258
      %v391 = vunpack.c.l.b16 %v259
      %v392 = vunpack.c.l.b16 %v260
      %v393 = vunpack.c.l.b16 %v261
      %v394 = vunpack.c.l.b16 %v262
      %v395 = vunpack.c.l.b16 %v263
      %v396 = vunpack.c.l.b16 %v264
      %v397 = vunpack.c.l.b16 %v265
      %v398 = vunpack.c.l.b16 %v266
      %v399 = vunpack.c.l.b16 %v267
      %v400 = vunpack.c.l.b16 %v268
      %v401 = vunpack.c.l.b16 %v269
      %v402 = vunpack.c.l.b16 %v270
      %v403 = vunpack.c.l.b16 %v271
      %v404 = vunpack.c.l.b16 %v272
      %v405 = vpack.c.b16 %v390, %v389
      %v406 = vpack.c.b16 %v392, %v391
      %v407 = vpack.c.b16 %v394, %v393
      %v408 = vpack.c.b16 %v396, %v395
      %v409 = vpack.c.b16 %v398, %v397
      %v410 = vpack.c.b16 %v400, %v399
      %v411 = vpack.c.b16 %v402, %v401
      %v412 = vpack.c.b16 %v404, %v403
      %421 = vmatpush.bf16.msra.mxu0 %v412
      %422 = vmatpush.bf16.msra.mxu0 %v411
      %423 = vmatpush.bf16.msra.mxu0 %v410
      %424 = vmatpush.bf16.msra.mxu0 %v409
      %425 = vmatpush.bf16.msra.mxu0 %v408
      %426 = vmatpush.bf16.msra.mxu0 %v407
      %427 = vmatpush.bf16.msra.mxu0 %v406
      %428 = vmatpush.bf16.msra.mxu0 %v405
      %429 = vmatmul.bf16.gmra.mxu0 %v341
      %v430 = vpop.f32.mrf.mxu0
      %v431 = vadd.f32 %v275, %v430
      %v432 = vpop.f32.mrf.mxu0
      %v433 = vadd.f32 %v275, %v432
      %434 = vmatmul.bf16.gmra.mxu0 %v342
      %v435 = vpop.f32.mrf.mxu0
      %v436 = vadd.f32 %v275, %v435
      %v437 = vpop.f32.mrf.mxu0
      %v438 = vadd.f32 %v275, %v437
      %439 = vmatmul.bf16.gmra.mxu0 %v343
      %v440 = vpop.f32.mrf.mxu0
      %v441 = vadd.f32 %v275, %v440
      %v442 = vpop.f32.mrf.mxu0
      %v443 = vadd.f32 %v275, %v442
      %444 = vmatmul.bf16.gmra.mxu0 %v344
      %v445 = vpop.f32.mrf.mxu0
      %v446 = vadd.f32 %v275, %v445
      %v447 = vpop.f32.mrf.mxu0
      %v448 = vadd.f32 %v275, %v447
      %449 = vmatmul.bf16.gmra.mxu0 %v345
      %v450 = vpop.f32.mrf.mxu0
      %v451 = vadd.f32 %v275, %v450
      %v452 = vpop.f32.mrf.mxu0
      %v453 = vadd.f32 %v275, %v452
      %454 = vmatmul.bf16.gmra.mxu0 %v346
      %v455 = vpop.f32.mrf.mxu0
      %v456 = vadd.f32 %v275, %v455
      %v457 = vpop.f32.mrf.mxu0
      %v458 = vadd.f32 %v275, %v457
      %459 = vmatmul.bf16.gmra.mxu0 %v347
      %v460 = vpop.f32.mrf.mxu0
      %v461 = vadd.f32 %v275, %v460
      %v462 = vpop.f32.mrf.mxu0
      %v463 = vadd.f32 %v275, %v462
      %464 = vmatmul.bf16.gmra.mxu0 %v348
      %v465 = vpop.f32.mrf.mxu0
      %v466 = vadd.f32 %v275, %v465
      %v467 = vpop.f32.mrf.mxu0
      %v468 = vadd.f32 %v275, %v467
      %469 = vmatmul.bf16.gmra.mxu0 %v349
      %v470 = vpop.f32.mrf.mxu0
      %v471 = vadd.f32 %v275, %v470
      %v472 = vpop.f32.mrf.mxu0
      %v473 = vadd.f32 %v275, %v472
      %474 = vmatmul.bf16.gmra.mxu0 %v350
      %v475 = vpop.f32.mrf.mxu0
      %v476 = vadd.f32 %v275, %v475
      %v477 = vpop.f32.mrf.mxu0
      %v478 = vadd.f32 %v275, %v477
      %479 = vmatmul.bf16.gmra.mxu0 %v351
      %v480 = vpop.f32.mrf.mxu0
      %v481 = vadd.f32 %v275, %v480
      %v482 = vpop.f32.mrf.mxu0
      %v483 = vadd.f32 %v275, %v482
      %484 = vmatmul.bf16.gmra.mxu0 %v352
      %v485 = vpop.f32.mrf.mxu0
      %v486 = vadd.f32 %v275, %v485
      %v487 = vpop.f32.mrf.mxu0
      %v488 = vadd.f32 %v275, %v487
      %489 = vmatmul.bf16.gmra.mxu0 %v353
      %v490 = vpop.f32.mrf.mxu0
      %v491 = vadd.f32 %v275, %v490
      %v492 = vpop.f32.mrf.mxu0
      %v493 = vadd.f32 %v275, %v492
      %494 = vmatmul.bf16.gmra.mxu0 %v354
      %v495 = vpop.f32.mrf.mxu0
      %v496 = vadd.f32 %v275, %v495
      %v497 = vpop.f32.mrf.mxu0
      %v498 = vadd.f32 %v275, %v497
      %499 = vmatmul.bf16.gmra.mxu0 %v355
      %v500 = vpop.f32.mrf.mxu0
      %v501 = vadd.f32 %v275, %v500
      %v502 = vpop.f32.mrf.mxu0
      %v503 = vadd.f32 %v275, %v502
      %504 = vmatmul.bf16.gmra.mxu0 %v356
      %v505 = vpop.f32.mrf.mxu0
      %v506 = vadd.f32 %v275, %v505
      %v507 = vpop.f32.mrf.mxu0
      %v508 = vadd.f32 %v275, %v507
      %509 = vdwg.mxu0
      %v510 = vmax.f32 %v431, 0.0
      %v511 = vmax.f32 %v433, 0.0
      %v512 = vmax.f32 %v436, 0.0
      %v513 = vmax.f32 %v438, 0.0
      %v514 = vmax.f32 %v441, 0.0
      %v515 = vmax.f32 %v443, 0.0
      %v516 = vmax.f32 %v446, 0.0
      %v517 = vmax.f32 %v448, 0.0
      %v518 = vmax.f32 %v451, 0.0
      %v519 = vmax.f32 %v453, 0.0
      %v520 = vmax.f32 %v456, 0.0
      %v521 = vmax.f32 %v458, 0.0
      %v522 = vmax.f32 %v461, 0.0
      %v523 = vmax.f32 %v463, 0.0
      %v524 = vmax.f32 %v466, 0.0
      %v525 = vmax.f32 %v468, 0.0
      %v526 = vmax.f32 %v471, 0.0
      %v527 = vmax.f32 %v473, 0.0
      %v528 = vmax.f32 %v476, 0.0
      %v529 = vmax.f32 %v478, 0.0
      %v530 = vmax.f32 %v481, 0.0
      %v531 = vmax.f32 %v483, 0.0
      %v532 = vmax.f32 %v486, 0.0
      %v533 = vmax.f32 %v488, 0.0
      %v534 = vmax.f32 %v491, 0.0
      %v535 = vmax.f32 %v493, 0.0
      %v536 = vmax.f32 %v496, 0.0
      %v537 = vmax.f32 %v498, 0.0
      %v538 = vmax.f32 %v501, 0.0
      %v539 = vmax.f32 %v503, 0.0
      %v540 = vmax.f32 %v506, 0.0
      %v541 = vmax.f32 %v508, 0.0
      %v542 = vpack.c.bf16 %v510, %v510
      %v543 = vpack.c.bf16 %v511, %v511
      %v544 = vpack.c.bf16 %v512, %v512
      %v545 = vpack.c.bf16 %v513, %v513
      %v546 = vpack.c.bf16 %v514, %v514
      %v547 = vpack.c.bf16 %v515, %v515
      %v548 = vpack.c.bf16 %v516, %v516
      %v549 = vpack.c.bf16 %v517, %v517
      %v550 = vpack.c.bf16 %v518, %v518
      %v551 = vpack.c.bf16 %v519, %v519
      %v552 = vpack.c.bf16 %v520, %v520
      %v553 = vpack.c.bf16 %v521, %v521
      %v554 = vpack.c.bf16 %v522, %v522
      %v555 = vpack.c.bf16 %v523, %v523
      %v556 = vpack.c.bf16 %v524, %v524
      %v557 = vpack.c.bf16 %v525, %v525
      %v558 = vpack.c.bf16 %v526, %v526
      %v559 = vpack.c.bf16 %v527, %v527
      %v560 = vpack.c.bf16 %v528, %v528
      %v561 = vpack.c.bf16 %v529, %v529
      %v562 = vpack.c.bf16 %v530, %v530
      %v563 = vpack.c.bf16 %v531, %v531
      %v564 = vpack.c.bf16 %v532, %v532
      %v565 = vpack.c.bf16 %v533, %v533
      %v566 = vpack.c.bf16 %v534, %v534
      %v567 = vpack.c.bf16 %v535, %v535
      %v568 = vpack.c.bf16 %v536, %v536
      %v569 = vpack.c.bf16 %v537, %v537
      %v570 = vpack.c.bf16 %v538, %v538
      %v571 = vpack.c.bf16 %v539, %v539
      %v572 = vpack.c.bf16 %v540, %v540
      %v573 = vpack.c.bf16 %v541, %v541
      %574 = vst [vmem:[%s223] sm:$0xf] %v542
      %575 = vst [vmem:[%s223 + $0x4] sm:$0xf] %v543
      %576 = vst [vmem:[%s223 + $0x8] sm:$0xf] %v544
      %577 = vst [vmem:[%s223 + $0xc] sm:$0xf] %v545
      %578 = vst [vmem:[%s223 + $0x10] sm:$0xf] %v546
      %579 = vst [vmem:[%s223 + $0x14] sm:$0xf] %v547
      %580 = vst [vmem:[%s223 + $0x18] sm:$0xf] %v548
      %581 = vst [vmem:[%s223 + $0x1c] sm:$0xf] %v549
      %582 = vst [vmem:[%s223 + $0x20] sm:$0xf] %v550
      %583 = vst [vmem:[%s223 + $0x24] sm:$0xf] %v551
      %584 = vst [vmem:[%s223 + $0x28] sm:$0xf] %v552
      %585 = vst [vmem:[%s223 + $0x2c] sm:$0xf] %v553
      %586 = vst [vmem:[%s223 + $0x30] sm:$0xf] %v554
      %587 = vst [vmem:[%s223 + $0x34] sm:$0xf] %v555
      %588 = vst [vmem:[%s223 + $0x38] sm:$0xf] %v556
      %589 = vst [vmem:[%s223 + $0x3c] sm:$0xf] %v557
      %590 = vst [vmem:[%s223 + $0x40] sm:$0xf] %v558
      %591 = vst [vmem:[%s223 + $0x44] sm:$0xf] %v559
      %592 = vst [vmem:[%s223 + $0x48] sm:$0xf] %v560
      %593 = vst [vmem:[%s223 + $0x4c] sm:$0xf] %v561
      %594 = vst [vmem:[%s223 + $0x50] sm:$0xf] %v562
      %595 = vst [vmem:[%s223 + $0x54] sm:$0xf] %v563
      %596 = vst [vmem:[%s223 + $0x58] sm:$0xf] %v564
      %597 = vst [vmem:[%s223 + $0x5c] sm:$0xf] %v565
      %598 = vst [vmem:[%s223 + $0x60] sm:$0xf] %v566
      %599 = vst [vmem:[%s223 + $0x64] sm:$0xf] %v567
      %600 = vst [vmem:[%s223 + $0x68] sm:$0xf] %v568
      %601 = vst [vmem:[%s223 + $0x6c] sm:$0xf] %v569
      %602 = vst [vmem:[%s223 + $0x70] sm:$0xf] %v570
      %603 = vst [vmem:[%s223 + $0x74] sm:$0xf] %v571
      %604 = vst [vmem:[%s223 + $0x78] sm:$0xf] %v572
      %605 = vst [vmem:[%s223 + $0x7c] sm:$0xf] %v573
      %s606 = smul.u32 32, %s18
      %p607 = scmp.lt.s32.totalorder %s606, 63
      %s608 = scalar_select %p607, %s606, 63
      %p609 = scmp.lt.s32.totalorder %s19, 0
      %s610 = scalar_select %p609, %s19, 0
      %s611 = sadd.s32 %s610, %s608
      %s612 = smul.addr %s611, 4
      %s613 = scalar_lea.vmem %s3, %s612
      // Predicated region
      $region33: #{bottleneck_forward.3} parent=31 // pred_check
        %p614 = pneg %p124
      $region34: #{bottleneck_forward.3} parent=31 // pred_check_branch
        %616 = sbr.rel (%p614) target = $region36
      $region35: #{bottleneck_forward.3} parent=31 // pred_region
        %s617 = smul.u32 32, %s18
      $region36: #{bottleneck_forward.3} parent=31 // pred_fallthru
        _
    $region32: #{bottleneck_forward.3} parent=5 // pred_fallthru
      _
    %p618 = scmp.le.s32.totalorder 2, %s9
    // Predicated region
    $region37: #{bottleneck_forward.3} parent=5 // pred_check
      %p619 = pneg %p618
    $region38: #{bottleneck_forward.3} parent=5 // pred_check_branch
      %621 = sbr.rel (%p619) target = $region40
    $region39: #{bottleneck_forward.3} parent=5 // pred_region
      %s622 = ssub.s32 %s9, 2
      // Predicated region
      $region41: #{bottleneck_forward.3} parent=39 // pred_check
        %p623 = pneg %p130
      $region42: #{bottleneck_forward.3} parent=39 // pred_check_branch
        %625 = sbr.rel (%p623) target = $region44
      $region43: #{bottleneck_forward.3} parent=39 // pred_region
        %s626 = smul.u32 32, %s20
        %p627 = scmp.lt.s32.totalorder %s626, 63
        %s628 = scalar_select %p627, %s626, 63
        %p629 = scmp.lt.s32.totalorder %s21, 0
        %s630 = scalar_select %p629, %s21, 0
        %s631 = sadd.s32 %s630, %s628
        %s632 = smul.addr %s631, 4
        %s633 = scalar_lea.vmem %s3, %s632
      $region44: #{bottleneck_forward.3} parent=39 // pred_fallthru
        _
    $region40: #{bottleneck_forward.3} parent=5 // pred_fallthru
      _
  $region6: #{bottleneck_forward.3} parent=0 // loop_footer
    %s13 = sadd.s32 1, %s9
  $region7: #{bottleneck_forward.3} parent=0 // loop_footer_branch
    %8 = sbr.rel target = $region3
  $region8: #{bottleneck_forward.3} parent=0 // loop_exit
    _

// kernel: bottleneck_forward.5
$region0: #{bottleneck_forward.5}
  #allocation0 [shape = 'u32[]', space=smem, size = 0x4, offset = 0x4, fixed_abs, tag = 'smem constant byte address 0x4 - core index']
  #allocation1 [shape = 'u32[72,128]{1,0:T(1,128)}', space=vmem, size = 0x9000, scoped, tag = 'internal scratch']
  %s0 = inlined_call_operand.vmem [shape: bf16[128,128], index: 0, kind: input, shape index: {}]
  %s1 = inlined_call_operand.vmem [shape: bf16[128,128], index: 1, kind: input, shape index: {}]
  %s2 = inlined_call_operand.vmem [shape: f32[1,128], index: 2, kind: input, shape index: {}]
  %s3 = inlined_call_operand.vmem [shape: bf16[128,128], index: 3, kind: input, shape index: {}]
  %s4 = inlined_call_operand.vmem [shape: bf16[128,128], index: 4, kind: input, shape index: {}]
  %s5 = inlined_call_operand.vmem [shape: f32[1,128], index: 5, kind: input, shape index: {}]
  %s6 = inlined_call_operand.vmem [shape: f32[128,128], index: 6, kind: output, shape index: {}]
  %s7 = sld [smem:[#allocation0]]
  $region34: #{bottleneck_forward.5} parent=0
    _
  %s9 = ssub.s32 1, %s7
  %s10 = scalar_select 0, %s9, %s7
  // Predicated region
  $region2: #{bottleneck_forward.5} parent=0 // pred_check
    _
  $region3: #{bottleneck_forward.5} parent=0 // pred_check_branch
    %12 = sbr.rel (0) target = $region5
  $region4: #{bottleneck_forward.5} parent=0 // pred_region
    _
  $region5: #{bottleneck_forward.5} parent=0 // pred_fallthru
    _
  // Predicated region
  $region6: #{bottleneck_forward.5} parent=0 // pred_check
    _
  $region7: #{bottleneck_forward.5} parent=0 // pred_check_branch
    %14 = sbr.rel (0) target = $region9
  $region8: #{bottleneck_forward.5} parent=0 // pred_region
    _
  $region9: #{bottleneck_forward.5} parent=0 // pred_fallthru
    _
  // Predicated region
  $region10: #{bottleneck_forward.5} parent=0 // pred_check
    _
  $region11: #{bottleneck_forward.5} parent=0 // pred_check_branch
    %16 = sbr.rel (0) target = $region13
  $region12: #{bottleneck_forward.5} parent=0 // pred_region
    _
  $region13: #{bottleneck_forward.5} parent=0 // pred_fallthru
    _
  // Predicated region
  $region14: #{bottleneck_forward.5} parent=0 // pred_check
    _
  $region15: #{bottleneck_forward.5} parent=0 // pred_check_branch
    %18 = sbr.rel (0) target = $region17
  $region16: #{bottleneck_forward.5} parent=0 // pred_region
    _
  $region17: #{bottleneck_forward.5} parent=0 // pred_fallthru
    _
  // Predicated region
  $region18: #{bottleneck_forward.5} parent=0 // pred_check
    _
  $region19: #{bottleneck_forward.5} parent=0 // pred_check_branch
    %20 = sbr.rel (0) target = $region21
  $region20: #{bottleneck_forward.5} parent=0 // pred_region
    _
  $region21: #{bottleneck_forward.5} parent=0 // pred_fallthru
    _
  // Predicated region
  $region22: #{bottleneck_forward.5} parent=0 // pred_check
    _
  $region23: #{bottleneck_forward.5} parent=0 // pred_check_branch
    %22 = sbr.rel (0) target = $region25
  $region24: #{bottleneck_forward.5} parent=0 // pred_region
    _
  $region25: #{bottleneck_forward.5} parent=0 // pred_fallthru
    _
  %v23 = vld [vmem:[%s0] sm:$0xf]
  %v24 = vld [vmem:[%s0 + $0x4] sm:$0xf]
  %v25 = vld [vmem:[%s0 + $0x8] sm:$0xf]
  %v26 = vld [vmem:[%s0 + $0xc] sm:$0xf]
  %v27 = vld [vmem:[%s0 + $0x10] sm:$0xf]
  %v28 = vld [vmem:[%s0 + $0x14] sm:$0xf]
  %v29 = vld [vmem:[%s0 + $0x18] sm:$0xf]
  %v30 = vld [vmem:[%s0 + $0x1c] sm:$0xf]
  %v31 = vld [vmem:[%s0 + $0x20] sm:$0xf]
  %v32 = vld [vmem:[%s0 + $0x24] sm:$0xf]
  %v33 = vld [vmem:[%s0 + $0x28] sm:$0xf]
  %v34 = vld [vmem:[%s0 + $0x2c] sm:$0xf]
  %v35 = vld [vmem:[%s0 + $0x30] sm:$0xf]
  %v36 = vld [vmem:[%s0 + $0x34] sm:$0xf]
  %v37 = vld [vmem:[%s0 + $0x38] sm:$0xf]
  %v38 = vld [vmem:[%s0 + $0x3c] sm:$0xf]
  %v39 = vld [vmem:[%s1] sm:$0xf]
  %v40 = vld [vmem:[%s1 + $0x4] sm:$0xf]
  %v41 = vld [vmem:[%s1 + $0x8] sm:$0xf]
  %v42 = vld [vmem:[%s1 + $0xc] sm:$0xf]
  %v43 = vld [vmem:[%s1 + $0x10] sm:$0xf]
  %v44 = vld [vmem:[%s1 + $0x14] sm:$0xf]
  %v45 = vld [vmem:[%s1 + $0x18] sm:$0xf]
  %v46 = vld [vmem:[%s1 + $0x1c] sm:$0xf]
  %v47 = vld [vmem:[%s1 + $0x20] sm:$0xf]
  %v48 = vld [vmem:[%s1 + $0x24] sm:$0xf]
  %v49 = vld [vmem:[%s1 + $0x28] sm:$0xf]
  %v50 = vld [vmem:[%s1 + $0x2c] sm:$0xf]
  %v51 = vld [vmem:[%s1 + $0x30] sm:$0xf]
  %v52 = vld [vmem:[%s1 + $0x34] sm:$0xf]
  %v53 = vld [vmem:[%s1 + $0x38] sm:$0xf]
  %v54 = vld [vmem:[%s1 + $0x3c] sm:$0xf]
  %v55 = vld [vmem:[%s2] sm:$0x1]
  %v57 = vperm.slane %v55, 0
  %v75 = vunpack.c.l.b16 %v23
  %v76 = vunpack.c.l.b16 %v24
  %v77 = vunpack.c.l.b16 %v25
  %v78 = vunpack.c.l.b16 %v26
  %v79 = vunpack.c.l.b16 %v27
  %v80 = vunpack.c.l.b16 %v28
  %v81 = vunpack.c.l.b16 %v29
  %v82 = vunpack.c.l.b16 %v30
  %v83 = vunpack.c.l.b16 %v31
  %v84 = vunpack.c.l.b16 %v32
  %v85 = vunpack.c.l.b16 %v33
  %v86 = vunpack.c.l.b16 %v34
  %v87 = vunpack.c.l.b16 %v35
  %v88 = vunpack.c.l.b16 %v36
  %v89 = vunpack.c.l.b16 %v37
  %v90 = vunpack.c.l.b16 %v38
  %v91 = vpack.c.b16 %v76, %v75
  %v92 = vpack.c.b16 %v78, %v77
  %v93 = vpack.c.b16 %v80, %v79
  %v94 = vpack.c.b16 %v82, %v81
  %v95 = vpack.c.b16 %v84, %v83
  %v96 = vpack.c.b16 %v86, %v85
  %v97 = vpack.c.b16 %v88, %v87
  %v98 = vpack.c.b16 %v90, %v89
  %v123 = vunpack.c.l.b16 %v39
  %v124 = vunpack.c.l.b16 %v40
  %v125 = vunpack.c.l.b16 %v41
  %v126 = vunpack.c.l.b16 %v42
  %v127 = vunpack.c.l.b16 %v43
  %v128 = vunpack.c.l.b16 %v44
  %v129 = vunpack.c.l.b16 %v45
  %v130 = vunpack.c.l.b16 %v46
  %v131 = vunpack.c.l.b16 %v47
  %v132 = vunpack.c.l.b16 %v48
  %v133 = vunpack.c.l.b16 %v49
  %v134 = vunpack.c.l.b16 %v50
  %v135 = vunpack.c.l.b16 %v51
  %v136 = vunpack.c.l.b16 %v52
  %v137 = vunpack.c.l.b16 %v53
  %v138 = vunpack.c.l.b16 %v54
  %v139 = vpack.c.b16 %v124, %v123
  %v140 = vpack.c.b16 %v126, %v125
  %v141 = vpack.c.b16 %v128, %v127
  %v142 = vpack.c.b16 %v130, %v129
  %v143 = vpack.c.b16 %v132, %v131
  %v144 = vpack.c.b16 %v134, %v133
  %v145 = vpack.c.b16 %v136, %v135
  %v146 = vpack.c.b16 %v138, %v137
  %155 = vmatpush.bf16.msra.mxu0 %v146
  %156 = vmatpush.bf16.msra.mxu0 %v145
  %157 = vmatpush.bf16.msra.mxu0 %v144
  %158 = vmatpush.bf16.msra.mxu0 %v143
  %159 = vmatpush.bf16.msra.mxu0 %v142
  %160 = vmatpush.bf16.msra.mxu0 %v141
  %161 = vmatpush.bf16.msra.mxu0 %v140
  %162 = vmatpush.bf16.msra.mxu0 %v139
  %163 = vmatmul.bf16.gmra.mxu0 %v91
  %v164 = vpop.f32.mrf.mxu0
  %v165 = vadd.f32 %v57, %v164
  %v166 = vpop.f32.mrf.mxu0
  %v167 = vadd.f32 %v57, %v166
  %168 = vmatmul.bf16.gmra.mxu0 %v92
  %v169 = vpop.f32.mrf.mxu0
  %v170 = vadd.f32 %v57, %v169
  %v171 = vpop.f32.mrf.mxu0
  %v172 = vadd.f32 %v57, %v171
  %173 = vmatmul.bf16.gmra.mxu0 %v93
  %v174 = vpop.f32.mrf.mxu0
  %v175 = vadd.f32 %v57, %v174
  %v176 = vpop.f32.mrf.mxu0
  %v177 = vadd.f32 %v57, %v176
  %178 = vmatmul.bf16.gmra.mxu0 %v94
  %v179 = vpop.f32.mrf.mxu0
  %v180 = vadd.f32 %v57, %v179
  %v181 = vpop.f32.mrf.mxu0
  %v182 = vadd.f32 %v57, %v181
  %183 = vmatmul.bf16.gmra.mxu0 %v95
  %v184 = vpop.f32.mrf.mxu0
  %v185 = vadd.f32 %v57, %v184
  %v186 = vpop.f32.mrf.mxu0
  %v187 = vadd.f32 %v57, %v186
  %188 = vmatmul.bf16.gmra.mxu0 %v96
  %v189 = vpop.f32.mrf.mxu0
  %v190 = vadd.f32 %v57, %v189
  %v191 = vpop.f32.mrf.mxu0
  %v192 = vadd.f32 %v57, %v191
  %193 = vmatmul.bf16.gmra.mxu0 %v97
  %v194 = vpop.f32.mrf.mxu0
  %v195 = vadd.f32 %v57, %v194
  %v196 = vpop.f32.mrf.mxu0
  %v197 = vadd.f32 %v57, %v196
  %198 = vmatmul.bf16.gmra.mxu0 %v98
  %v199 = vpop.f32.mrf.mxu0
  %v200 = vadd.f32 %v57, %v199
  %v201 = vpop.f32.mrf.mxu0
  %v202 = vadd.f32 %v57, %v201
  %203 = vdwg.mxu0
  %v204 = vld [vmem:[%s3] sm:$0xf]
  %v205 = vld [vmem:[%s3 + $0x4] sm:$0xf]
  %v206 = vld [vmem:[%s3 + $0x8] sm:$0xf]
  %v207 = vld [vmem:[%s3 + $0xc] sm:$0xf]
  %v208 = vld [vmem:[%s3 + $0x10] sm:$0xf]
  %v209 = vld [vmem:[%s3 + $0x14] sm:$0xf]
  %v210 = vld [vmem:[%s3 + $0x18] sm:$0xf]
  %v211 = vld [vmem:[%s3 + $0x1c] sm:$0xf]
  %v212 = vld [vmem:[%s3 + $0x20] sm:$0xf]
  %v213 = vld [vmem:[%s3 + $0x24] sm:$0xf]
  %v214 = vld [vmem:[%s3 + $0x28] sm:$0xf]
  %v215 = vld [vmem:[%s3 + $0x2c] sm:$0xf]
  %v216 = vld [vmem:[%s3 + $0x30] sm:$0xf]
  %v217 = vld [vmem:[%s3 + $0x34] sm:$0xf]
  %v218 = vld [vmem:[%s3 + $0x38] sm:$0xf]
  %v219 = vld [vmem:[%s3 + $0x3c] sm:$0xf]
  %v220 = vld [vmem:[%s4] sm:$0xf]
  %v221 = vld [vmem:[%s4 + $0x4] sm:$0xf]
  %v222 = vld [vmem:[%s4 + $0x8] sm:$0xf]
  %v223 = vld [vmem:[%s4 + $0xc] sm:$0xf]
  %v224 = vld [vmem:[%s4 + $0x10] sm:$0xf]
  %v225 = vld [vmem:[%s4 + $0x14] sm:$0xf]
  %v226 = vld [vmem:[%s4 + $0x18] sm:$0xf]
  %v227 = vld [vmem:[%s4 + $0x1c] sm:$0xf]
  %v228 = vld [vmem:[%s4 + $0x20] sm:$0xf]
  %v229 = vld [vmem:[%s4 + $0x24] sm:$0xf]
  %v230 = vld [vmem:[%s4 + $0x28] sm:$0xf]
  %v231 = vld [vmem:[%s4 + $0x2c] sm:$0xf]
  %v232 = vld [vmem:[%s4 + $0x30] sm:$0xf]
  %v233 = vld [vmem:[%s4 + $0x34] sm:$0xf]
  %v234 = vld [vmem:[%s4 + $0x38] sm:$0xf]
  %v235 = vld [vmem:[%s4 + $0x3c] sm:$0xf]
  %v252 = vunpack.c.l.b16 %v204
  %v253 = vunpack.c.l.b16 %v205
  %v254 = vunpack.c.l.b16 %v206
  %v255 = vunpack.c.l.b16 %v207
  %v256 = vunpack.c.l.b16 %v208
  %v257 = vunpack.c.l.b16 %v209
  %v258 = vunpack.c.l.b16 %v210
  %v259 = vunpack.c.l.b16 %v211
  %v260 = vunpack.c.l.b16 %v212
  %v261 = vunpack.c.l.b16 %v213
  %v262 = vunpack.c.l.b16 %v214
  %v263 = vunpack.c.l.b16 %v215
  %v264 = vunpack.c.l.b16 %v216
  %v265 = vunpack.c.l.b16 %v217
  %v266 = vunpack.c.l.b16 %v218
  %v267 = vunpack.c.l.b16 %v219
  %v268 = vpack.c.b16 %v253, %v252
  %v269 = vpack.c.b16 %v255, %v254
  %v270 = vpack.c.b16 %v257, %v256
  %v271 = vpack.c.b16 %v259, %v258
  %v272 = vpack.c.b16 %v261, %v260
  %v273 = vpack.c.b16 %v263, %v262
  %v274 = vpack.c.b16 %v265, %v264
  %v275 = vpack.c.b16 %v267, %v266
  %v300 = vunpack.c.l.b16 %v220
  %v301 = vunpack.c.l.b16 %v221
  %v302 = vunpack.c.l.b16 %v222
  %v303 = vunpack.c.l.b16 %v223
  %v304 = vunpack.c.l.b16 %v224
  %v305 = vunpack.c.l.b16 %v225
  %v306 = vunpack.c.l.b16 %v226
  %v307 = vunpack.c.l.b16 %v227
  %v308 = vunpack.c.l.b16 %v228
  %v309 = vunpack.c.l.b16 %v229
  %v310 = vunpack.c.l.b16 %v230
  %v311 = vunpack.c.l.b16 %v231
  %v312 = vunpack.c.l.b16 %v232
  %v313 = vunpack.c.l.b16 %v233
  %v314 = vunpack.c.l.b16 %v234
  %v315 = vunpack.c.l.b16 %v235
  %v316 = vpack.c.b16 %v301, %v300
  %v317 = vpack.c.b16 %v303, %v302
  %v318 = vpack.c.b16 %v305, %v304
  %v319 = vpack.c.b16 %v307, %v306
  %v320 = vpack.c.b16 %v309, %v308
  %v321 = vpack.c.b16 %v311, %v310
  %v322 = vpack.c.b16 %v313, %v312
  %v323 = vpack.c.b16 %v315, %v314
  %332 = vmatpush.bf16.msra.mxu0 %v323
  %333 = vmatpush.bf16.msra.mxu0 %v322
  %334 = vmatpush.bf16.msra.mxu0 %v321
  %335 = vmatpush.bf16.msra.mxu0 %v320
  %336 = vmatpush.bf16.msra.mxu0 %v319
  %337 = vmatpush.bf16.msra.mxu0 %v318
  %338 = vmatpush.bf16.msra.mxu0 %v317
  %339 = vmatpush.bf16.msra.mxu0 %v316
  %340 = vmatmul.bf16.gmra.mxu0 %v268
  %v341 = vpop.f32.mrf.mxu0
  %v342 = vadd.f32 0.0, %v341
  %v343 = vpop.f32.mrf.mxu0
  %v344 = vadd.f32 0.0, %v343
  %345 = vmatmul.bf16.gmra.mxu0 %v269
  %v346 = vpop.f32.mrf.mxu0
  %v347 = vadd.f32 0.0, %v346
  %v348 = vpop.f32.mrf.mxu0
  %v349 = vadd.f32 0.0, %v348
  %350 = vmatmul.bf16.gmra.mxu0 %v270
  %v351 = vpop.f32.mrf.mxu0
  %v352 = vadd.f32 0.0, %v351
  %v353 = vpop.f32.mrf.mxu0
  %v354 = vadd.f32 0.0, %v353
  %355 = vmatmul.bf16.gmra.mxu0 %v271
  %v356 = vpop.f32.mrf.mxu0
  %v357 = vadd.f32 0.0, %v356
  %v358 = vpop.f32.mrf.mxu0
  %v359 = vadd.f32 0.0, %v358
  %360 = vmatmul.bf16.gmra.mxu0 %v272
  %v361 = vpop.f32.mrf.mxu0
  %v362 = vadd.f32 0.0, %v361
  %v363 = vpop.f32.mrf.mxu0
  %v364 = vadd.f32 0.0, %v363
  %365 = vmatmul.bf16.gmra.mxu0 %v273
  %v366 = vpop.f32.mrf.mxu0
  %v367 = vadd.f32 0.0, %v366
  %v368 = vpop.f32.mrf.mxu0
  %v369 = vadd.f32 0.0, %v368
  %370 = vmatmul.bf16.gmra.mxu0 %v274
  %v371 = vpop.f32.mrf.mxu0
  %v372 = vadd.f32 0.0, %v371
  %v373 = vpop.f32.mrf.mxu0
  %v374 = vadd.f32 0.0, %v373
  %375 = vmatmul.bf16.gmra.mxu0 %v275
  %v376 = vpop.f32.mrf.mxu0
  %v377 = vadd.f32 0.0, %v376
  %v378 = vpop.f32.mrf.mxu0
  %v379 = vadd.f32 0.0, %v378
  %380 = vdwg.mxu0
  %v381 = vadd.f32 %v165, %v342
  %v382 = vadd.f32 %v167, %v344
  %v383 = vadd.f32 %v170, %v347
  %v384 = vadd.f32 %v172, %v349
  %v385 = vadd.f32 %v175, %v352
  %v386 = vadd.f32 %v177, %v354
  %v387 = vadd.f32 %v180, %v357
  %v388 = vadd.f32 %v182, %v359
  %v389 = vadd.f32 %v185, %v362
  %v390 = vadd.f32 %v187, %v364
  %v391 = vadd.f32 %v190, %v367
  %v392 = vadd.f32 %v192, %v369
  %v393 = vadd.f32 %v195, %v372
  %v394 = vadd.f32 %v197, %v374
  %v395 = vadd.f32 %v200, %v377
  %v396 = vadd.f32 %v202, %v379
  %v397 = vld [vmem:[%s5] sm:$0x1]
  %v399 = vperm.slane %v397, 0
  %v401 = vadd.f32 %v381, %v399
  %v402 = vadd.f32 %v382, %v399
  %v403 = vadd.f32 %v383, %v399
  %v404 = vadd.f32 %v384, %v399
  %v405 = vadd.f32 %v385, %v399
  %v406 = vadd.f32 %v386, %v399
  %v407 = vadd.f32 %v387, %v399
  %v408 = vadd.f32 %v388, %v399
  %v409 = vadd.f32 %v389, %v399
  %v410 = vadd.f32 %v390, %v399
  %v411 = vadd.f32 %v391, %v399
  %v412 = vadd.f32 %v392, %v399
  %v413 = vadd.f32 %v393, %v399
  %v414 = vadd.f32 %v394, %v399
  %v415 = vadd.f32 %v395, %v399
  %v416 = vadd.f32 %v396, %v399
  %v417 = vmax.f32 %v401, 0.0
  %v418 = vmax.f32 %v402, 0.0
  %v419 = vmax.f32 %v403, 0.0
  %v420 = vmax.f32 %v404, 0.0
  %v421 = vmax.f32 %v405, 0.0
  %v422 = vmax.f32 %v406, 0.0
  %v423 = vmax.f32 %v407, 0.0
  %v424 = vmax.f32 %v408, 0.0
  %v425 = vmax.f32 %v409, 0.0
  %v426 = vmax.f32 %v410, 0.0
  %v427 = vmax.f32 %v411, 0.0
  %v428 = vmax.f32 %v412, 0.0
  %v429 = vmax.f32 %v413, 0.0
  %v430 = vmax.f32 %v414, 0.0
  %v431 = vmax.f32 %v415, 0.0
  %v432 = vmax.f32 %v416, 0.0
  %433 = vst [vmem:[%s6] sm:$0xff] %v417
  %434 = vst [vmem:[%s6 + $0x8] sm:$0xff] %v418
  %435 = vst [vmem:[%s6 + $0x10] sm:$0xff] %v419
  %436 = vst [vmem:[%s6 + $0x18] sm:$0xff] %v420
  %437 = vst [vmem:[%s6 + $0x20] sm:$0xff] %v421
  %438 = vst [vmem:[%s6 + $0x28] sm:$0xff] %v422
  %439 = vst [vmem:[%s6 + $0x30] sm:$0xff] %v423
  %440 = vst [vmem:[%s6 + $0x38] sm:$0xff] %v424
  %441 = vst [vmem:[%s6 + $0x40] sm:$0xff] %v425
  %442 = vst [vmem:[%s6 + $0x48] sm:$0xff] %v426
  %443 = vst [vmem:[%s6 + $0x50] sm:$0xff] %v427
  %444 = vst [vmem:[%s6 + $0x58] sm:$0xff] %v428
  %445 = vst [vmem:[%s6 + $0x60] sm:$0xff] %v429
  %446 = vst [vmem:[%s6 + $0x68] sm:$0xff] %v430
  %447 = vst [vmem:[%s6 + $0x70] sm:$0xff] %v431
  %448 = vst [vmem:[%s6 + $0x78] sm:$0xff] %v432
  // Predicated region
  $region26: #{bottleneck_forward.5} parent=0 // pred_check
    _
  $region27: #{bottleneck_forward.5} parent=0 // pred_check_branch
    %450 = sbr.rel (0) target = $region29
  $region28: #{bottleneck_forward.5} parent=0 // pred_region
    _
  $region29: #{bottleneck_forward.5} parent=0 // pred_fallthru
    _
  // Predicated region
  $region30: #{bottleneck_forward.5} parent=0 // pred_check
    _
  $region31: #{bottleneck_forward.5} parent=0 // pred_check_branch
    %452 = sbr.rel (0) target = $region33
  $region32: #{bottleneck_forward.5} parent=0 // pred_region
    _
  $region33: #{bottleneck_forward.5} parent=0 // pred_fallthru
    _

// kernel: bottleneck_forward.4
$region0: #{bottleneck_forward.4}
  #allocation0 [shape = 'u32[]', space=smem, size = 0x4, offset = 0x4, fixed_abs, tag = 'smem constant byte address 0x4 - core index']
  #allocation1 [shape = 'u32[72,128]{1,0:T(1,128)}', space=vmem, size = 0x9000, scoped, tag = 'internal scratch']
  %s0 = inlined_call_operand.vmem [shape: bf16[8,9,9,128], index: 0, kind: input, shape index: {}]
  %s1 = inlined_call_operand.vmem [shape: bf16[9,128,128], index: 1, kind: input, shape index: {}]
  %s2 = inlined_call_operand.vmem [shape: f32[1,128], index: 2, kind: input, shape index: {}]
  %s3 = inlined_call_operand.vmem [shape: bf16[2,8,8,128], index: 3, kind: output, shape index: {}]
  %s4 = sld [smem:[#allocation0]]
  $region45: #{bottleneck_forward.4} parent=0
    _
  %s6 = ssub.s32 1, %s4
  %s7 = scalar_select 0, %s6, %s4
  loop: start=0, step=1, limit=4
  $region2: #{bottleneck_forward.4} parent=0 // loop_pre_header
    _
  $region3: #{bottleneck_forward.4} parent=0 // loop_header
    %s9 = sphi 0, %s13
    %p10 = scmp.ge.s32.totalorder %s9, 4
    %s16 = sphi 0, %s28
    %s17 = sphi 0, %s24
    %s18 = sphi 0, %s16
    %s19 = sphi 0, %s17
    %s20 = sphi 0, %s18
    %s21 = sphi 0, %s19
    %s31 = sphi 0, %s33
    %s34 = sphi 0, %s31
    %s35 = sphi 0, %s34
    %s51 = sphi 0, %s35
    %s57 = sphi 0, %s59
    %s60 = sphi 0, %s57
    %s61 = sphi 0, %s60
    %s77 = sphi 0, %s61
    %s83 = sphi 0, %s85
    %s86 = sphi 0, %s83
    %s87 = sphi 0, %s86
    %s103 = sphi 0, %s87
    %s111 = sphi 0, %s113
    %s114 = sphi 0, %s111
    %s115 = sphi 0, %s114
    %s131 = sphi 0, %s115
  $region4: #{bottleneck_forward.4} parent=0 // loop_header_branch
    %12 = sbr.rel (%p10) target = $region8
  $region5: #{bottleneck_forward.4} parent=0 // loop_body
    %s14 = ssub.s32 %s9, 1
    %s15 = ssub.s32 %s9, 2
    %s22 = sadd.s32 1, %s17
    %p23 = scmp.ge.s32.totalorder %s22, 1
    %s24 = scalar_select %p23, 0, %s22
    %s25 = sadd.s32 1, %s16
    %s26 = scalar_select %p23, %s25, %s16
    %p27 = scmp.ge.s32.totalorder %s26, 2
    %s28 = scalar_select %p27, 0, %s26
    %s29 = ssub.s32 %s16, %s28
    %p30 = scmp.eq.s32.totalorder %s29, 0
    %s32 = sadd.s32 %s31, 1
    %s33 = scalar_select %p30, %s31, %s32
    %p36 = pneg %p30
    %p37 = scmp.eq.s32.totalorder %s9, 1
    %p38 = por %p36, %p37
    %p39 = scmp.ne.s32.totalorder %s31, %s34
    %p40 = scmp.eq.s32.totalorder %s9, 0
    %p41 = por %p39, %p40
    %p42 = scmp.ne.s32.totalorder %s31, %s34
    %p43 = scmp.eq.s32.totalorder %s14, 1
    %p44 = por %p42, %p43
    %p45 = scmp.ne.s32.totalorder %s34, %s35
    %p46 = scmp.eq.s32.totalorder %s14, 0
    %p47 = por %p45, %p46
    %p48 = scmp.ne.s32.totalorder %s34, %s35
    %p49 = scmp.eq.s32.totalorder %s15, 1
    %p50 = por %p48, %p49
    %p52 = scmp.ne.s32.totalorder %s35, %s51
    %p53 = scmp.eq.s32.totalorder %s15, 0
    %p54 = por %p52, %p53
    %s55 = ssub.s32 %s17, %s24
    %p56 = scmp.eq.s32.totalorder %s55, 0
    %s58 = sadd.s32 %s57, 1
    %s59 = scalar_select %p56, %s57, %s58
    %p62 = pneg %p56
    %p63 = scmp.eq.s32.totalorder %s9, 1
    %p64 = por %p62, %p63
    %p65 = scmp.ne.s32.totalorder %s57, %s60
    %p66 = scmp.eq.s32.totalorder %s9, 0
    %p67 = por %p65, %p66
    %p68 = scmp.ne.s32.totalorder %s57, %s60
    %p69 = scmp.eq.s32.totalorder %s14, 1
    %p70 = por %p68, %p69
    %p71 = scmp.ne.s32.totalorder %s60, %s61
    %p72 = scmp.eq.s32.totalorder %s14, 0
    %p73 = por %p71, %p72
    %p74 = scmp.ne.s32.totalorder %s60, %s61
    %p75 = scmp.eq.s32.totalorder %s15, 1
    %p76 = por %p74, %p75
    %p78 = scmp.ne.s32.totalorder %s61, %s77
    %p79 = scmp.eq.s32.totalorder %s15, 0
    %p80 = por %p78, %p79
    %s81 = ssub.s32 %s17, %s24
    %p82 = scmp.eq.s32.totalorder %s81, 0
    %s84 = sadd.s32 %s83, 1
    %s85 = scalar_select %p82, %s83, %s84
    %p88 = pneg %p82
    %p89 = scmp.eq.s32.totalorder %s9, 1
    %p90 = por %p88, %p89
    %p91 = scmp.ne.s32.totalorder %s83, %s86
    %p92 = scmp.eq.s32.totalorder %s9, 0
    %p93 = por %p91, %p92
    %p94 = scmp.ne.s32.totalorder %s83, %s86
    %p95 = scmp.eq.s32.totalorder %s14, 1
    %p96 = por %p94, %p95
    %p97 = scmp.ne.s32.totalorder %s86, %s87
    %p98 = scmp.eq.s32.totalorder %s14, 0
    %p99 = por %p97, %p98
    %p100 = scmp.ne.s32.totalorder %s86, %s87
    %p101 = scmp.eq.s32.totalorder %s15, 1
    %p102 = por %p100, %p101
    %p104 = scmp.ne.s32.totalorder %s87, %s103
    %p105 = scmp.eq.s32.totalorder %s15, 0
    %p106 = por %p104, %p105
    %s107 = ssub.s32 %s16, %s28
    %s108 = ssub.s32 %s17, %s24
    %s109 = sor.u32 %s107, %s108
    %p110 = scmp.eq.s32.totalorder %s109, 0
    %s112 = sadd.s32 %s111, 1
    %s113 = scalar_select %p110, %s111, %s112
    %p116 = pneg %p110
    %p117 = scmp.eq.s32.totalorder %s9, 1
    %p118 = por %p116, %p117
    %p119 = scmp.ne.s32.totalorder %s111, %s114
    %p120 = scmp.eq.s32.totalorder %s9, 0
    %p121 = por %p119, %p120
    %p122 = scmp.ne.s32.totalorder %s111, %s114
    %p123 = scmp.eq.s32.totalorder %s14, 1
    %p124 = por %p122, %p123
    %p125 = scmp.ne.s32.totalorder %s114, %s115
    %p126 = scmp.eq.s32.totalorder %s14, 0
    %p127 = por %p125, %p126
    %p128 = scmp.ne.s32.totalorder %s114, %s115
    %p129 = scmp.eq.s32.totalorder %s15, 1
    %p130 = por %p128, %p129
    %p132 = scmp.ne.s32.totalorder %s115, %s131
    %p133 = scmp.eq.s32.totalorder %s15, 0
    %p134 = por %p132, %p133
    %p135 = scmp.le.s32.totalorder 1, %s9
    %p136 = scmp.lt.s32.totalorder %s9, 3
    %p137 = pnand %p135, %p136
    %p138 = pneg %p137
    // Predicated region
    $region9: #{bottleneck_forward.4} parent=5 // pred_check
      _
    $region10: #{bottleneck_forward.4} parent=5 // pred_check_branch
      %140 = sbr.rel (%p137) target = $region12
    $region11: #{bottleneck_forward.4} parent=5 // pred_region
      %s141 = ssub.s32 %s9, 1
      // Predicated region
      $region13: #{bottleneck_forward.4} parent=11 // pred_check
        %p142 = pneg %p73
      $region14: #{bottleneck_forward.4} parent=11 // pred_check_branch
        %144 = sbr.rel (%p142) target = $region16
      $region15: #{bottleneck_forward.4} parent=11 // pred_region
        %p145 = scmp.lt.s32.totalorder %s19, 0
        %s146 = scalar_select %p145, %s19, 0
        %s147 = smul.addr %s146, 4
        %s148 = scalar_lea.vmem %s1, %s147
      $region16: #{bottleneck_forward.4} parent=11 // pred_fallthru
        _
      // Predicated region
      $region17: #{bottleneck_forward.4} parent=11 // pred_check
        %p149 = pneg %p99
      $region18: #{bottleneck_forward.4} parent=11 // pred_check_branch
        %151 = sbr.rel (%p149) target = $region20
      $region19: #{bottleneck_forward.4} parent=11 // pred_region
        %p152 = scmp.lt.s32.totalorder %s19, 0
        %s153 = scalar_select %p152, %s19, 0
        %s154 = scalar_lea.vmem %s2, %s153
      $region20: #{bottleneck_forward.4} parent=11 // pred_fallthru
        _
    $region12: #{bottleneck_forward.4} parent=5 // pred_fallthru
      _
    %p155 = scmp.lt.s32.totalorder %s9, 2
    // Predicated region
    $region21: #{bottleneck_forward.4} parent=5 // pred_check
      %p156 = pneg %p155
    $region22: #{bottleneck_forward.4} parent=5 // pred_check_branch
      %158 = sbr.rel (%p156) target = $region24
    $region23: #{bottleneck_forward.4} parent=5 // pred_region
      // Predicated region
      $region25: #{bottleneck_forward.4} parent=23 // pred_check
        %p159 = pneg %p41
      $region26: #{bottleneck_forward.4} parent=23 // pred_check_branch
        %161 = sbr.rel (%p159) target = $region28
      $region27: #{bottleneck_forward.4} parent=23 // pred_region
        %s162 = smul.u32 4, %s16
        %p163 = scmp.lt.s32.totalorder %s162, 7
        %s164 = scalar_select %p163, %s162, 7
        %s165 = smul.addr %s164, 18
        %s166 = smul.addr %s165, 4
        %s167 = scalar_lea.vmem %s0, %s166
        %s168 = smul.u32 4, %s16
      $region28: #{bottleneck_forward.4} parent=23 // pred_fallthru
        _
    $region24: #{bottleneck_forward.4} parent=5 // pred_fallthru
      _
    %p169 = scmp.le.s32.totalorder 1, %s9
    %p170 = scmp.lt.s32.totalorder %s9, 3
    %p171 = pnand %p169, %p170
    %p172 = pneg %p171
    // Predicated region
    $region29: #{bottleneck_forward.4} parent=5 // pred_check
      _
    $region30: #{bottleneck_forward.4} parent=5 // pred_check_branch
      %174 = sbr.rel (%p171) target = $region32
    $region31: #{bottleneck_forward.4} parent=5 // pred_region
      %s175 = ssub.s32 %s9, 1
      %s176 = smul.u32 4, %s18
      %p177 = scmp.lt.s32.totalorder %s176, 7
      %s178 = scalar_select %p177, %s176, 7
      %s179 = smul.addr %s178, 18
      %s180 = smul.addr %s179, 4
      %s181 = scalar_lea.vmem %s0, %s180
      %p182 = pneg %p47
      %p183 = pneg %p44
      %p184 = scmp.lt.s32.totalorder %s19, 0
      %s185 = scalar_select %p184, %s19, 0
      %s186 = smul.addr %s185, 4
      %s187 = scalar_lea.vmem %s1, %s186
      %p188 = pneg %p73
      %p189 = pneg %p70
      %p190 = scmp.lt.s32.totalorder %s19, 0
      %s191 = scalar_select %p190, %s19, 0
      %s192 = scalar_lea.vmem %s2, %s191
      %p193 = pneg %p99
      %p194 = pneg %p96
      %p195 = pneg %p127
      %p196 = pneg %p124
      %p197 = scmp.lt.s32.totalorder %s18, 1
      %s198 = scalar_select %p197, %s18, 1
      %p199 = scmp.lt.s32.totalorder %s19, 0
      %s200 = scalar_select %p199, %s19, 0
      %s201 = smul.addr %s198, 8
      %s202 = sadd.s32 %s200, %s201
      %s203 = smul.addr %s202, 4
      %s204 = scalar_lea.vmem %s3, %s203
      %s205 = smul.u32 4, %s18
      %p206 = scmp.lt.s32.totalorder %s205, 7
      %s207 = scalar_select %p206, %s205, 7
      %s208 = smul.addr %s207, 18
      %s209 = smul.addr %s208, 4
      %s210 = scalar_lea.vmem %s0, %s209
      %s211 = smul.u32 4, %s18
      %p212 = scmp.lt.s32.totalorder %s19, 0
      %s213 = scalar_select %p212, %s19, 0
      %s214 = smul.addr %s213, 4
      %s215 = scalar_lea.vmem %s1, %s214
      %p216 = scmp.lt.s32.totalorder %s19, 0
      %s217 = scalar_select %p216, %s19, 0
      %s218 = scalar_lea.vmem %s2, %s217
      %p219 = scmp.lt.s32.totalorder %s18, 1
      %s220 = scalar_select %p219, %s18, 1
      %p221 = scmp.lt.s32.totalorder %s19, 0
      %s222 = scalar_select %p221, %s19, 0
      %s223 = smul.addr %s220, 8
      %s224 = sadd.s32 %s222, %s223
      %s225 = smul.addr %s224, 4
      %s226 = scalar_lea.vmem %s3, %s225
      %v227 = vld [vmem:[%s210] sm:$0xf]
      %v228 = vld [vmem:[%s210 + $0x8] sm:$0xf]
      %v229 = vld [vmem:[%s210 + $0x10] sm:$0xf]
      %v230 = vld [vmem:[%s210 + $0x18] sm:$0xf]
      %v231 = vld [vmem:[%s210 + $0x20] sm:$0xf]
      %v232 = vld [vmem:[%s210 + $0x28] sm:$0xf]
      %v233 = vld [vmem:[%s210 + $0x30] sm:$0xf]
      %v234 = vld [vmem:[%s210 + $0x38] sm:$0xf]
      %v235 = vld [vmem:[%s215] sm:$0xf]
      %v236 = vld [vmem:[%s215 + $0x4] sm:$0xf]
      %v237 = vld [vmem:[%s215 + $0x8] sm:$0xf]
      %v238 = vld [vmem:[%s215 + $0xc] sm:$0xf]
      %v239 = vld [vmem:[%s215 + $0x10] sm:$0xf]
      %v240 = vld [vmem:[%s215 + $0x14] sm:$0xf]
      %v241 = vld [vmem:[%s215 + $0x18] sm:$0xf]
      %v242 = vld [vmem:[%s215 + $0x1c] sm:$0xf]
      %v243 = vld [vmem:[%s215 + $0x20] sm:$0xf]
      %v244 = vld [vmem:[%s215 + $0x24] sm:$0xf]
      %v245 = vld [vmem:[%s215 + $0x28] sm:$0xf]
      %v246 = vld [vmem:[%s215 + $0x2c] sm:$0xf]
      %v247 = vld [vmem:[%s215 + $0x30] sm:$0xf]
      %v248 = vld [vmem:[%s215 + $0x34] sm:$0xf]
      %v249 = vld [vmem:[%s215 + $0x38] sm:$0xf]
      %v250 = vld [vmem:[%s215 + $0x3c] sm:$0xf]
      %s251 = scalar_lea.vmem %s210, 72
      %v252 = vld [vmem:[%s251] sm:$0xf]
      %v253 = vld [vmem:[%s251 + $0x8] sm:$0xf]
      %v254 = vld [vmem:[%s251 + $0x10] sm:$0xf]
      %v255 = vld [vmem:[%s251 + $0x18] sm:$0xf]
      %v256 = vld [vmem:[%s251 + $0x20] sm:$0xf]
      %v257 = vld [vmem:[%s251 + $0x28] sm:$0xf]
      %v258 = vld [vmem:[%s251 + $0x30] sm:$0xf]
      %v259 = vld [vmem:[%s251 + $0x38] sm:$0xf]
      %s260 = scalar_lea.vmem %s215, 64
      %v261 = vld [vmem:[%s260] sm:$0xf]
      %v262 = vld [vmem:[%s260 + $0x4] sm:$0xf]
      %v263 = vld [vmem:[%s260 + $0x8] sm:$0xf]
      %v264 = vld [vmem:[%s260 + $0xc] sm:$0xf]
      %v265 = vld [vmem:[%s260 + $0x10] sm:$0xf]
      %v266 = vld [vmem:[%s260 + $0x14] sm:$0xf]
      %v267 = vld [vmem:[%s260 + $0x18] sm:$0xf]
      %v268 = vld [vmem:[%s260 + $0x1c] sm:$0xf]
      %v269 = vld [vmem:[%s260 + $0x20] sm:$0xf]
      %v270 = vld [vmem:[%s260 + $0x24] sm:$0xf]
      %v271 = vld [vmem:[%s260 + $0x28] sm:$0xf]
      %v272 = vld [vmem:[%s260 + $0x2c] sm:$0xf]
      %v273 = vld [vmem:[%s260 + $0x30] sm:$0xf]
      %v274 = vld [vmem:[%s260 + $0x34] sm:$0xf]
      %v275 = vld [vmem:[%s260 + $0x38] sm:$0xf]
      %v276 = vld [vmem:[%s260 + $0x3c] sm:$0xf]
      %v285 = vunpack.c.l.b16 %v252
      %v286 = vunpack.c.l.b16 %v253
      %v287 = vunpack.c.l.b16 %v254
      %v288 = vunpack.c.l.b16 %v255
      %v289 = vunpack.c.l.b16 %v256
      %v290 = vunpack.c.l.b16 %v257
      %v291 = vunpack.c.l.b16 %v258
      %v292 = vunpack.c.l.b16 %v259
      %v293 = vpack.c.b16 %v286, %v285
      %v294 = vpack.c.b16 %v288, %v287
      %v295 = vpack.c.b16 %v290, %v289
      %v296 = vpack.c.b16 %v292, %v291
      %v317 = vunpack.c.l.b16 %v261
      %v318 = vunpack.c.l.b16 %v262
      %v319 = vunpack.c.l.b16 %v263
      %v320 = vunpack.c.l.b16 %v264
      %v321 = vunpack.c.l.b16 %v265
      %v322 = vunpack.c.l.b16 %v266
      %v323 = vunpack.c.l.b16 %v267
      %v324 = vunpack.c.l.b16 %v268
      %v325 = vunpack.c.l.b16 %v269
      %v326 = vunpack.c.l.b16 %v270
      %v327 = vunpack.c.l.b16 %v271
      %v328 = vunpack.c.l.b16 %v272
      %v329 = vunpack.c.l.b16 %v273
      %v330 = vunpack.c.l.b16 %v274
      %v331 = vunpack.c.l.b16 %v275
      %v332 = vunpack.c.l.b16 %v276
      %v333 = vpack.c.b16 %v318, %v317
      %v334 = vpack.c.b16 %v320, %v319
      %v335 = vpack.c.b16 %v322, %v321
      %v336 = vpack.c.b16 %v324, %v323
      %v337 = vpack.c.b16 %v326, %v325
      %v338 = vpack.c.b16 %v328, %v327
      %v339 = vpack.c.b16 %v330, %v329
      %v340 = vpack.c.b16 %v332, %v331
      %349 = vmatpush.bf16.msra.mxu0 %v340
      %350 = vmatpush.bf16.msra.mxu0 %v339
      %351 = vmatpush.bf16.msra.mxu0 %v338
      %352 = vmatpush.bf16.msra.mxu0 %v337
      %353 = vmatpush.bf16.msra.mxu0 %v336
      %354 = vmatpush.bf16.msra.mxu0 %v335
      %355 = vmatpush.bf16.msra.mxu0 %v334
      %356 = vmatpush.bf16.msra.mxu0 %v333
      %357 = vmatmul.bf16.gmra.mxu0 %v293
      %v358 = vpop.f32.mrf.mxu0
      %v359 = vadd.f32 0.0, %v358
      %v360 = vpop.f32.mrf.mxu0
      %v361 = vadd.f32 0.0, %v360
      %362 = vmatmul.bf16.gmra.mxu0 %v294
      %v363 = vpop.f32.mrf.mxu0
      %v364 = vadd.f32 0.0, %v363
      %v365 = vpop.f32.mrf.mxu0
      %v366 = vadd.f32 0.0, %v365
      %367 = vmatmul.bf16.gmra.mxu0 %v295
      %v368 = vpop.f32.mrf.mxu0
      %v369 = vadd.f32 0.0, %v368
      %v370 = vpop.f32.mrf.mxu0
      %v371 = vadd.f32 0.0, %v370
      %372 = vmatmul.bf16.gmra.mxu0 %v296
      %v373 = vpop.f32.mrf.mxu0
      %v374 = vadd.f32 0.0, %v373
      %v375 = vpop.f32.mrf.mxu0
      %v376 = vadd.f32 0.0, %v375
      %377 = vdwg.mxu0
      %v386 = vunpack.c.l.b16 %v227
      %v387 = vunpack.c.l.b16 %v228
      %v388 = vunpack.c.l.b16 %v229
      %v389 = vunpack.c.l.b16 %v230
      %v390 = vunpack.c.l.b16 %v231
      %v391 = vunpack.c.l.b16 %v232
      %v392 = vunpack.c.l.b16 %v233
      %v393 = vunpack.c.l.b16 %v234
      %v394 = vpack.c.b16 %v387, %v386
      %v395 = vpack.c.b16 %v389, %v388
      %v396 = vpack.c.b16 %v391, %v390
      %v397 = vpack.c.b16 %v393, %v392
      %v418 = vunpack.c.l.b16 %v235
      %v419 = vunpack.c.l.b16 %v236
      %v420 = vunpack.c.l.b16 %v237
      %v421 = vunpack.c.l.b16 %v238
      %v422 = vunpack.c.l.b16 %v239
      %v423 = vunpack.c.l.b16 %v240
      %v424 = vunpack.c.l.b16 %v241
      %v425 = vunpack.c.l.b16 %v242
      %v426 = vunpack.c.l.b16 %v243
      %v427 = vunpack.c.l.b16 %v244
      %v428 = vunpack.c.l.b16 %v245
      %v429 = vunpack.c.l.b16 %v246
      %v430 = vunpack.c.l.b16 %v247
      %v431 = vunpack.c.l.b16 %v248
      %v432 = vunpack.c.l.b16 %v249
      %v433 = vunpack.c.l.b16 %v250
      %v434 = vpack.c.b16 %v419, %v418
      %v435 = vpack.c.b16 %v421, %v420
      %v436 = vpack.c.b16 %v423, %v422
      %v437 = vpack.c.b16 %v425, %v424
      %v438 = vpack.c.b16 %v427, %v426
      %v439 = vpack.c.b16 %v429, %v428
      %v440 = vpack.c.b16 %v431, %v430
      %v441 = vpack.c.b16 %v433, %v432
      %450 = vmatpush.bf16.msra.mxu0 %v441
      %451 = vmatpush.bf16.msra.mxu0 %v440
      %452 = vmatpush.bf16.msra.mxu0 %v439
      %453 = vmatpush.bf16.msra.mxu0 %v438
      %454 = vmatpush.bf16.msra.mxu0 %v437
      %455 = vmatpush.bf16.msra.mxu0 %v436
      %456 = vmatpush.bf16.msra.mxu0 %v435
      %457 = vmatpush.bf16.msra.mxu0 %v434
      %458 = vmatmul.bf16.gmra.mxu0 %v394
      %v459 = vpop.f32.mrf.mxu0
      %v460 = vadd.f32 %v359, %v459
      %v461 = vpop.f32.mrf.mxu0
      %v462 = vadd.f32 %v361, %v461
      %463 = vmatmul.bf16.gmra.mxu0 %v395
      %v464 = vpop.f32.mrf.mxu0
      %v465 = vadd.f32 %v364, %v464
      %v466 = vpop.f32.mrf.mxu0
      %v467 = vadd.f32 %v366, %v466
      %468 = vmatmul.bf16.gmra.mxu0 %v396
      %v469 = vpop.f32.mrf.mxu0
      %v470 = vadd.f32 %v369, %v469
      %v471 = vpop.f32.mrf.mxu0
      %v472 = vadd.f32 %v371, %v471
      %473 = vmatmul.bf16.gmra.mxu0 %v397
      %v474 = vpop.f32.mrf.mxu0
      %v475 = vadd.f32 %v374, %v474
      %v476 = vpop.f32.mrf.mxu0
      %v477 = vadd.f32 %v376, %v476
      %478 = vdwg.mxu0
      %v479 = vld [vmem:[%s210] sm:$0xf]
      %v480 = vld [vmem:[%s210 + $0x4] sm:$0x1]
      %v481 = vld [vmem:[%s210 + $0x8] sm:$0xf]
      %v482 = vld [vmem:[%s210 + $0xc] sm:$0x1]
      %v483 = vld [vmem:[%s210 + $0x10] sm:$0xf]
      %v484 = vld [vmem:[%s210 + $0x14] sm:$0x1]
      %v485 = vld [vmem:[%s210 + $0x18] sm:$0xf]
      %v486 = vld [vmem:[%s210 + $0x1c] sm:$0x1]
      %v487 = vld [vmem:[%s210 + $0x20] sm:$0xf]
      %v488 = vld [vmem:[%s210 + $0x24] sm:$0x1]
      %v489 = vld [vmem:[%s210 + $0x28] sm:$0xf]
      %v490 = vld [vmem:[%s210 + $0x2c] sm:$0x1]
      %v491 = vld [vmem:[%s210 + $0x30] sm:$0xf]
      %v492 = vld [vmem:[%s210 + $0x34] sm:$0x1]
      %v493 = vld [vmem:[%s210 + $0x38] sm:$0xf]
      %v494 = vld [vmem:[%s210 + $0x3c] sm:$0x1]
      %vm495 = vsmask.f32 3328
      %vm496 = vsmask.f32 7440
      %vm497 = vmor %vm495, %vm496
      %v499 = vshrl.u32 %v479, 16
      %v501 = vrot.slane %v499, 4
      %v502 = vshll.u32 %v479, 16
      %v504 = vrot.slane %v502, 5
      %v505 = vor.u32 %v501, %v504
      %v506 = vrot.slane %v505, 4
      %v508 = vshll.u32 %v480, 16
      %v510 = vrot.slane %v508, 5
      %v511 = vsel %vm497, %v506, %v510
      %v513 = vshrl.u32 %v481, 16
      %v515 = vrot.slane %v513, 4
      %v516 = vshll.u32 %v481, 16
      %v518 = vrot.slane %v516, 5
      %v519 = vor.u32 %v515, %v518
      %v520 = vrot.slane %v519, 4
      %v522 = vshll.u32 %v482, 16
      %v524 = vrot.slane %v522, 5
      %v525 = vsel %vm497, %v520, %v524
      %v527 = vshrl.u32 %v483, 16
      %v529 = vrot.slane %v527, 4
      %v530 = vshll.u32 %v483, 16
      %v532 = vrot.slane %v530, 5
      %v533 = vor.u32 %v529, %v532
      %v534 = vrot.slane %v533, 4
      %v536 = vshll.u32 %v484, 16
      %v538 = vrot.slane %v536, 5
      %v539 = vsel %vm497, %v534, %v538
      %v541 = vshrl.u32 %v485, 16
      %v543 = vrot.slane %v541, 4
      %v544 = vshll.u32 %v485, 16
      %v546 = vrot.slane %v544, 5
      %v547 = vor.u32 %v543, %v546
      %v548 = vrot.slane %v547, 4
      %v550 = vshll.u32 %v486, 16
      %v552 = vrot.slane %v550, 5
      %v553 = vsel %vm497, %v548, %v552
      %v555 = vshrl.u32 %v487, 16
      %v557 = vrot.slane %v555, 4
      %v558 = vshll.u32 %v487, 16
      %v560 = vrot.slane %v558, 5
      %v561 = vor.u32 %v557, %v560
      %v562 = vrot.slane %v561, 4
      %v564 = vshll.u32 %v488, 16
      %v566 = vrot.slane %v564, 5
      %v567 = vsel %vm497, %v562, %v566
      %v569 = vshrl.u32 %v489, 16
      %v571 = vrot.slane %v569, 4
      %v572 = vshll.u32 %v489, 16
      %v574 = vrot.slane %v572, 5
      %v575 = vor.u32 %v571, %v574
      %v576 = vrot.slane %v575, 4
      %v578 = vshll.u32 %v490, 16
      %v580 = vrot.slane %v578, 5
      %v581 = vsel %vm497, %v576, %v580
      %v583 = vshrl.u32 %v491, 16
      %v585 = vrot.slane %v583, 4
      %v586 = vshll.u32 %v491, 16
      %v588 = vrot.slane %v586, 5
      %v589 = vor.u32 %v585, %v588
      %v590 = vrot.slane %v589, 4
      %v592 = vshll.u32 %v492, 16
      %v594 = vrot.slane %v592, 5
      %v595 = vsel %vm497, %v590, %v594
      %v597 = vshrl.u32 %v493, 16
      %v599 = vrot.slane %v597, 4
      %v600 = vshll.u32 %v493, 16
      %v602 = vrot.slane %v600, 5
      %v603 = vor.u32 %v599, %v602
      %v604 = vrot.slane %v603, 4
      %v606 = vshll.u32 %v494, 16
      %v608 = vrot.slane %v606, 5
      %v609 = vsel %vm497, %v604, %v608
      %s610 = scalar_lea.vmem %s215, 128
      %v611 = vld [vmem:[%s610] sm:$0xf]
      %v612 = vld [vmem:[%s610 + $0x4] sm:$0xf]
      %v613 = vld [vmem:[%s610 + $0x8] sm:$0xf]
      %v614 = vld [vmem:[%s610 + $0xc] sm:$0xf]
      %v615 = vld [vmem:[%s610 + $0x10] sm:$0xf]
      %v616 = vld [vmem:[%s610 + $0x14] sm:$0xf]
      %v617 = vld [vmem:[%s610 + $0x18] sm:$0xf]
      %v618 = vld [vmem:[%s610 + $0x1c] sm:$0xf]
      %v619 = vld [vmem:[%s610 + $0x20] sm:$0xf]
      %v620 = vld [vmem:[%s610 + $0x24] sm:$0xf]
      %v621 = vld [vmem:[%s610 + $0x28] sm:$0xf]
      %v622 = vld [vmem:[%s610 + $0x2c] sm:$0xf]
      %v623 = vld [vmem:[%s610 + $0x30] sm:$0xf]
      %v624 = vld [vmem:[%s610 + $0x34] sm:$0xf]
      %v625 = vld [vmem:[%s610 + $0x38] sm:$0xf]
      %v626 = vld [vmem:[%s610 + $0x3c] sm:$0xf]
      %v627 = vunpack.c.l.b16 %v511
      %v628 = vunpack.c.l.b16 %v525
      %v629 = vunpack.c.l.b16 %v539
      %v630 = vunpack.c.l.b16 %v553
      %v631 = vunpack.c.l.b16 %v567
      %v632 = vunpack.c.l.b16 %v581
      %v633 = vunpack.c.l.b16 %v595
      %v634 = vunpack.c.l.b16 %v609
      %v635 = vpack.c.b16 %v628, %v627
      %v636 = vpack.c.b16 %v630, %v629
      %v637 = vpack.c.b16 %v632, %v631
      %v638 = vpack.c.b16 %v634, %v633
      %v659 = vunpack.c.l.b16 %v611
      %v660 = vunpack.c.l.b16 %v612
      %v661 = vunpack.c.l.b16 %v613
      %v662 = vunpack.c.l.b16 %v614
      %v663 = vunpack.c.l.b16 %v615
      %v664 = vunpack.c.l.b16 %v616
      %v665 = vunpack.c.l.b16 %v617
      %v666 = vunpack.c.l.b16 %v618
      %v667 = vunpack.c.l.b16 %v619
      %v668 = vunpack.c.l.b16 %v620
      %v669 = vunpack.c.l.b16 %v621
      %v670 = vunpack.c.l.b16 %v622
      %v671 = vunpack.c.l.b16 %v623
      %v672 = vunpack.c.l.b16 %v624
      %v673 = vunpack.c.l.b16 %v625
      %v674 = vunpack.c.l.b16 %v626
      %v675 = vpack.c.b16 %v660, %v659
      %v676 = vpack.c.b16 %v662, %v661
      %v677 = vpack.c.b16 %v664, %v663
      %v678 = vpack.c.b16 %v666, %v665
      %v679 = vpack.c.b16 %v668, %v667
      %v680 = vpack.c.b16 %v670, %v669
      %v681 = vpack.c.b16 %v672, %v671
      %v682 = vpack.c.b16 %v674, %v673
      %691 = vmatpush.bf16.msra.mxu0 %v682
      %692 = vmatpush.bf16.msra.mxu0 %v681
      %693 = vmatpush.bf16.msra.mxu0 %v680
      %694 = vmatpush.bf16.msra.mxu0 %v679
      %695 = vmatpush.bf16.msra.mxu0 %v678
      %696 = vmatpush.bf16.msra.mxu0 %v677
      %697 = vmatpush.bf16.msra.mxu0 %v676
      %698 = vmatpush.bf16.msra.mxu0 %v675
      %699 = vmatmul.bf16.gmra.mxu0 %v635
      %v700 = vpop.f32.mrf.mxu0
      %v701 = vadd.f32 0.0, %v700
      %v702 = vpop.f32.mrf.mxu0
      %v703 = vadd.f32 0.0, %v702
      %704 = vmatmul.bf16.gmra.mxu0 %v636
      %v705 = vpop.f32.mrf.mxu0
      %v706 = vadd.f32 0.0, %v705
      %v707 = vpop.f32.mrf.mxu0
      %v708 = vadd.f32 0.0, %v707
      %709 = vmatmul.bf16.gmra.mxu0 %v637
      %v710 = vpop.f32.mrf.mxu0
      %v711 = vadd.f32 0.0, %v710
      %v712 = vpop.f32.mrf.mxu0
      %v713 = vadd.f32 0.0, %v712
      %714 = vmatmul.bf16.gmra.mxu0 %v638
      %v715 = vpop.f32.mrf.mxu0
      %v716 = vadd.f32 0.0, %v715
      %v717 = vpop.f32.mrf.mxu0
      %v718 = vadd.f32 0.0, %v717
      %719 = vdwg.mxu0
      %v720 = vadd.f32 %v460, %v701
      %v721 = vadd.f32 %v462, %v703
      %v722 = vadd.f32 %v465, %v706
      %v723 = vadd.f32 %v467, %v708
      %v724 = vadd.f32 %v470, %v711
      %v725 = vadd.f32 %v472, %v713
      %v726 = vadd.f32 %v475, %v716
      %v727 = vadd.f32 %v477, %v718
      %s728 = scalar_lea.vmem %s210, 144
      %v729 = vld [vmem:[%s728] sm:$0xf]
      %v730 = vld [vmem:[%s728 + $0x8] sm:$0xf]
      %v731 = vld [vmem:[%s728 + $0x10] sm:$0xf]
      %v732 = vld [vmem:[%s728 + $0x18] sm:$0xf]
      %v733 = vld [vmem:[%s728 + $0x20] sm:$0xf]
      %v734 = vld [vmem:[%s728 + $0x28] sm:$0xf]
      %v735 = vld [vmem:[%s728 + $0x30] sm:$0xf]
      %v736 = vld [vmem:[%s728 + $0x38] sm:$0xf]
      %s737 = scalar_lea.vmem %s215, 192
      %v738 = vld [vmem:[%s737] sm:$0xf]
      %v739 = vld [vmem:[%s737 + $0x4] sm:$0xf]
      %v740 = vld [vmem:[%s737 + $0x8] sm:$0xf]
      %v741 = vld [vmem:[%s737 + $0xc] sm:$0xf]
      %v742 = vld [vmem:[%s737 + $0x10] sm:$0xf]
      %v743 = vld [vmem:[%s737 + $0x14] sm:$0xf]
      %v744 = vld [vmem:[%s737 + $0x18] sm:$0xf]
      %v745 = vld [vmem:[%s737 + $0x1c] sm:$0xf]
      %v746 = vld [vmem:[%s737 + $0x20] sm:$0xf]
      %v747 = vld [vmem:[%s737 + $0x24] sm:$0xf]
      %v748 = vld [vmem:[%s737 + $0x28] sm:$0xf]
      %v749 = vld [vmem:[%s737 + $0x2c] sm:$0xf]
      %v750 = vld [vmem:[%s737 + $0x30] sm:$0xf]
      %v751 = vld [vmem:[%s737 + $0x34] sm:$0xf]
      %v752 = vld [vmem:[%s737 + $0x38] sm:$0xf]
      %v753 = vld [vmem:[%s737 + $0x3c] sm:$0xf]
      %v762 = vunpack.c.l.b16 %v729
      %v763 = vunpack.c.l.b16 %v730
      %v764 = vunpack.c.l.b16 %v731
      %v765 = vunpack.c.l.b16 %v732
      %v766 = vunpack.c.l.b16 %v733
      %v767 = vunpack.c.l.b16 %v734
      %v768 = vunpack.c.l.b16 %v735
      %v769 = vunpack.c.l.b16 %v736
      %v770 = vpack.c.b16 %v763, %v762
      %v771 = vpack.c.b16 %v765, %v764
      %v772 = vpack.c.b16 %v767, %v766
      %v773 = vpack.c.b16 %v769, %v768
      %v794 = vunpack.c.l.b16 %v738
      %v795 = vunpack.c.l.b16 %v739
      %v796 = vunpack.c.l.b16 %v740
      %v797 = vunpack.c.l.b16 %v741
      %v798 = vunpack.c.l.b16 %v742
      %v799 = vunpack.c.l.b16 %v743
      %v800 = vunpack.c.l.b16 %v744
      %v801 = vunpack.c.l.b16 %v745
      %v802 = vunpack.c.l.b16 %v746
      %v803 = vunpack.c.l.b16 %v747
      %v804 = vunpack.c.l.b16 %v748
      %v805 = vunpack.c.l.b16 %v749
      %v806 = vunpack.c.l.b16 %v750
      %v807 = vunpack.c.l.b16 %v751
      %v808 = vunpack.c.l.b16 %v752
      %v809 = vunpack.c.l.b16 %v753
      %v810 = vpack.c.b16 %v795, %v794
      %v811 = vpack.c.b16 %v797, %v796
      %v812 = vpack.c.b16 %v799, %v798
      %v813 = vpack.c.b16 %v801, %v800
      %v814 = vpack.c.b16 %v803, %v802
      %v815 = vpack.c.b16 %v805, %v804
      %v816 = vpack.c.b16 %v807, %v806
      %v817 = vpack.c.b16 %v809, %v808
      %826 = vmatpush.bf16.msra.mxu0 %v817
      %827 = vmatpush.bf16.msra.mxu0 %v816
      %828 = vmatpush.bf16.msra.mxu0 %v815
      %829 = vmatpush.bf16.msra.mxu0 %v814
      %830 = vmatpush.bf16.msra.mxu0 %v813
      %831 = vmatpush.bf16.msra.mxu0 %v812
      %832 = vmatpush.bf16.msra.mxu0 %v811
      %833 = vmatpush.bf16.msra.mxu0 %v810
      %834 = vmatmul.bf16.gmra.mxu0 %v770
      %v835 = vpop.f32.mrf.mxu0
      %v836 = vadd.f32 0.0, %v835
      %v837 = vpop.f32.mrf.mxu0
      %v838 = vadd.f32 0.0, %v837
      %839 = vmatmul.bf16.gmra.mxu0 %v771
      %v840 = vpop.f32.mrf.mxu0
      %v841 = vadd.f32 0.0, %v840
      %v842 = vpop.f32.mrf.mxu0
      %v843 = vadd.f32 0.0, %v842
      %844 = vmatmul.bf16.gmra.mxu0 %v772
      %v845 = vpop.f32.mrf.mxu0
      %v846 = vadd.f32 0.0, %v845
      %v847 = vpop.f32.mrf.mxu0
      %v848 = vadd.f32 0.0, %v847
      %849 = vmatmul.bf16.gmra.mxu0 %v773
      %v850 = vpop.f32.mrf.mxu0
      %v851 = vadd.f32 0.0, %v850
      %v852 = vpop.f32.mrf.mxu0
      %v853 = vadd.f32 0.0, %v852
      %854 = vdwg.mxu0
      %v855 = vadd.f32 %v720, %v836
      %v856 = vadd.f32 %v721, %v838
      %v857 = vadd.f32 %v722, %v841
      %v858 = vadd.f32 %v723, %v843
      %v859 = vadd.f32 %v724, %v846
      %v860 = vadd.f32 %v725, %v848
      %v861 = vadd.f32 %v726, %v851
      %v862 = vadd.f32 %v727, %v853
      %s863 = scalar_lea.vmem %s210, 216
      %v864 = vld [vmem:[%s863] sm:$0xf]
      %v865 = vld [vmem:[%s863 + $0x8] sm:$0xf]
      %v866 = vld [vmem:[%s863 + $0x10] sm:$0xf]
      %v867 = vld [vmem:[%s863 + $0x18] sm:$0xf]
      %v868 = vld [vmem:[%s863 + $0x20] sm:$0xf]
      %v869 = vld [vmem:[%s863 + $0x28] sm:$0xf]
      %v870 = vld [vmem:[%s863 + $0x30] sm:$0xf]
      %v871 = vld [vmem:[%s863 + $0x38] sm:$0xf]
      %s872 = scalar_lea.vmem %s215, 256
      %v873 = vld [vmem:[%s872] sm:$0xf]
      %v874 = vld [vmem:[%s872 + $0x4] sm:$0xf]
      %v875 = vld [vmem:[%s872 + $0x8] sm:$0xf]
      %v876 = vld [vmem:[%s872 + $0xc] sm:$0xf]
      %v877 = vld [vmem:[%s872 + $0x10] sm:$0xf]
      %v878 = vld [vmem:[%s872 + $0x14] sm:$0xf]
      %v879 = vld [vmem:[%s872 + $0x18] sm:$0xf]
      %v880 = vld [vmem:[%s872 + $0x1c] sm:$0xf]
      %v881 = vld [vmem:[%s872 + $0x20] sm:$0xf]
      %v882 = vld [vmem:[%s872 + $0x24] sm:$0xf]
      %v883 = vld [vmem:[%s872 + $0x28] sm:$0xf]
      %v884 = vld [vmem:[%s872 + $0x2c] sm:$0xf]
      %v885 = vld [vmem:[%s872 + $0x30] sm:$0xf]
      %v886 = vld [vmem:[%s872 + $0x34] sm:$0xf]
      %v887 = vld [vmem:[%s872 + $0x38] sm:$0xf]
      %v888 = vld [vmem:[%s872 + $0x3c] sm:$0xf]
      %v897 = vunpack.c.l.b16 %v864
      %v898 = vunpack.c.l.b16 %v865
      %v899 = vunpack.c.l.b16 %v866
      %v900 = vunpack.c.l.b16 %v867
      %v901 = vunpack.c.l.b16 %v868
      %v902 = vunpack.c.l.b16 %v869
      %v903 = vunpack.c.l.b16 %v870
      %v904 = vunpack.c.l.b16 %v871
      %v905 = vpack.c.b16 %v898, %v897
      %v906 = vpack.c.b16 %v900, %v899
      %v907 = vpack.c.b16 %v902, %v901
      %v908 = vpack.c.b16 %v904, %v903
      %v929 = vunpack.c.l.b16 %v873
      %v930 = vunpack.c.l.b16 %v874
      %v931 = vunpack.c.l.b16 %v875
      %v932 = vunpack.c.l.b16 %v876
      %v933 = vunpack.c.l.b16 %v877
      %v934 = vunpack.c.l.b16 %v878
      %v935 = vunpack.c.l.b16 %v879
      %v936 = vunpack.c.l.b16 %v880
      %v937 = vunpack.c.l.b16 %v881
      %v938 = vunpack.c.l.b16 %v882
      %v939 = vunpack.c.l.b16 %v883
      %v940 = vunpack.c.l.b16 %v884
      %v941 = vunpack.c.l.b16 %v885
      %v942 = vunpack.c.l.b16 %v886
      %v943 = vunpack.c.l.b16 %v887
      %v944 = vunpack.c.l.b16 %v888
      %v945 = vpack.c.b16 %v930, %v929
      %v946 = vpack.c.b16 %v932, %v931
      %v947 = vpack.c.b16 %v934, %v933
      %v948 = vpack.c.b16 %v936, %v935
      %v949 = vpack.c.b16 %v938, %v937
      %v950 = vpack.c.b16 %v940, %v939
      %v951 = vpack.c.b16 %v942, %v941
      %v952 = vpack.c.b16 %v944, %v943
      %961 = vmatpush.bf16.msra.mxu0 %v952
      %962 = vmatpush.bf16.msra.mxu0 %v951
      %963 = vmatpush.bf16.msra.mxu0 %v950
      %964 = vmatpush.bf16.msra.mxu0 %v949
      %965 = vmatpush.bf16.msra.mxu0 %v948
      %966 = vmatpush.bf16.msra.mxu0 %v947
      %967 = vmatpush.bf16.msra.mxu0 %v946
      %968 = vmatpush.bf16.msra.mxu0 %v945
      %969 = vmatmul.bf16.gmra.mxu0 %v905
      %v970 = vpop.f32.mrf.mxu0
      %v971 = vadd.f32 0.0, %v970
      %v972 = vpop.f32.mrf.mxu0
      %v973 = vadd.f32 0.0, %v972
      %974 = vmatmul.bf16.gmra.mxu0 %v906
      %v975 = vpop.f32.mrf.mxu0
      %v976 = vadd.f32 0.0, %v975
      %v977 = vpop.f32.mrf.mxu0
      %v978 = vadd.f32 0.0, %v977
      %979 = vmatmul.bf16.gmra.mxu0 %v907
      %v980 = vpop.f32.mrf.mxu0
      %v981 = vadd.f32 0.0, %v980
      %v982 = vpop.f32.mrf.mxu0
      %v983 = vadd.f32 0.0, %v982
      %984 = vmatmul.bf16.gmra.mxu0 %v908
      %v985 = vpop.f32.mrf.mxu0
      %v986 = vadd.f32 0.0, %v985
      %v987 = vpop.f32.mrf.mxu0
      %v988 = vadd.f32 0.0, %v987
      %989 = vdwg.mxu0
      %v990 = vadd.f32 %v855, %v971
      %v991 = vadd.f32 %v856, %v973
      %v992 = vadd.f32 %v857, %v976
      %v993 = vadd.f32 %v858, %v978
      %v994 = vadd.f32 %v859, %v981
      %v995 = vadd.f32 %v860, %v983
      %v996 = vadd.f32 %v861, %v986
      %v997 = vadd.f32 %v862, %v988
      %v998 = vld [vmem:[%s728] sm:$0xf]
      %v999 = vld [vmem:[%s728 + $0x4] sm:$0x1]
      %v1000 = vld [vmem:[%s728 + $0x8] sm:$0xf]
      %v1001 = vld [vmem:[%s728 + $0xc] sm:$0x1]
      %v1002 = vld [vmem:[%s728 + $0x10] sm:$0xf]
      %v1003 = vld [vmem:[%s728 + $0x14] sm:$0x1]
      %v1004 = vld [vmem:[%s728 + $0x18] sm:$0xf]
      %v1005 = vld [vmem:[%s728 + $0x1c] sm:$0x1]
      %v1006 = vld [vmem:[%s728 + $0x20] sm:$0xf]
      %v1007 = vld [vmem:[%s728 + $0x24] sm:$0x1]
      %v1008 = vld [vmem:[%s728 + $0x28] sm:$0xf]
      %v1009 = vld [vmem:[%s728 + $0x2c] sm:$0x1]
      %v1010 = vld [vmem:[%s728 + $0x30] sm:$0xf]
      %v1011 = vld [vmem:[%s728 + $0x34] sm:$0x1]
      %v1012 = vld [vmem:[%s728 + $0x38] sm:$0xf]
      %v1013 = vld [vmem:[%s728 + $0x3c] sm:$0x1]
      %v1015 = vshrl.u32 %v998, 16
      %v1017 = vrot.slane %v1015, 4
      %v1018 = vshll.u32 %v998, 16
      %v1020 = vrot.slane %v1018, 5
      %v1021 = vor.u32 %v1017, %v1020
      %v1022 = vrot.slane %v1021, 4
      %v1024 = vshll.u32 %v999, 16
      %v1026 = vrot.slane %v1024, 5
      %v1027 = vsel %vm497, %v1022, %v1026
      %v1029 = vshrl.u32 %v1000, 16
      %v1031 = vrot.slane %v1029, 4
      %v1032 = vshll.u32 %v1000, 16
      %v1034 = vrot.slane %v1032, 5
      %v1035 = vor.u32 %v1031, %v1034
      %v1036 = vrot.slane %v1035, 4
      %v1038 = vshll.u32 %v1001, 16
      %v1040 = vrot.slane %v1038, 5
      %v1041 = vsel %vm497, %v1036, %v1040
      %v1043 = vshrl.u32 %v1002, 16
      %v1045 = vrot.slane %v1043, 4
      %v1046 = vshll.u32 %v1002, 16
      %v1048 = vrot.slane %v1046, 5
      %v1049 = vor.u32 %v1045, %v1048
      %v1050 = vrot.slane %v1049, 4
      %v1052 = vshll.u32 %v1003, 16
      %v1054 = vrot.slane %v1052, 5
      %v1055 = vsel %vm497, %v1050, %v1054
      %v1057 = vshrl.u32 %v1004, 16
      %v1059 = vrot.slane %v1057, 4
      %v1060 = vshll.u32 %v1004, 16
      %v1062 = vrot.slane %v1060, 5
      %v1063 = vor.u32 %v1059, %v1062
      %v1064 = vrot.slane %v1063, 4
      %v1066 = vshll.u32 %v1005, 16
      %v1068 = vrot.slane %v1066, 5
      %v1069 = vsel %vm497, %v1064, %v1068
      %v1071 = vshrl.u32 %v1006, 16
      %v1073 = vrot.slane %v1071, 4
      %v1074 = vshll.u32 %v1006, 16
      %v1076 = vrot.slane %v1074, 5
      %v1077 = vor.u32 %v1073, %v1076
      %v1078 = vrot.slane %v1077, 4
      %v1080 = vshll.u32 %v1007, 16
      %v1082 = vrot.slane %v1080, 5
      %v1083 = vsel %vm497, %v1078, %v1082
      %v1085 = vshrl.u32 %v1008, 16
      %v1087 = vrot.slane %v1085, 4
      %v1088 = vshll.u32 %v1008, 16
      %v1090 = vrot.slane %v1088, 5
      %v1091 = vor.u32 %v1087, %v1090
      %v1092 = vrot.slane %v1091, 4
      %v1094 = vshll.u32 %v1009, 16
      %v1096 = vrot.slane %v1094, 5
      %v1097 = vsel %vm497, %v1092, %v1096
      %v1099 = vshrl.u32 %v1010, 16
      %v1101 = vrot.slane %v1099, 4
      %v1102 = vshll.u32 %v1010, 16
      %v1104 = vrot.slane %v1102, 5
      %v1105 = vor.u32 %v1101, %v1104
      %v1106 = vrot.slane %v1105, 4
      %v1108 = vshll.u32 %v1011, 16
      %v1110 = vrot.slane %v1108, 5
      %v1111 = vsel %vm497, %v1106, %v1110
      %v1113 = vshrl.u32 %v1012, 16
      %v1115 = vrot.slane %v1113, 4
      %v1116 = vshll.u32 %v1012, 16
      %v1118 = vrot.slane %v1116, 5
      %v1119 = vor.u32 %v1115, %v1118
      %v1120 = vrot.slane %v1119, 4
      %v1122 = vshll.u32 %v1013, 16
      %v1124 = vrot.slane %v1122, 5
      %v1125 = vsel %vm497, %v1120, %v1124
      %s1126 = scalar_lea.vmem %s215, 320
      %v1127 = vld [vmem:[%s1126] sm:$0xf]
      %v1128 = vld [vmem:[%s1126 + $0x4] sm:$0xf]
      %v1129 = vld [vmem:[%s1126 + $0x8] sm:$0xf]
      %v1130 = vld [vmem:[%s1126 + $0xc] sm:$0xf]
      %v1131 = vld [vmem:[%s1126 + $0x10] sm:$0xf]
      %v1132 = vld [vmem:[%s1126 + $0x14] sm:$0xf]
      %v1133 = vld [vmem:[%s1126 + $0x18] sm:$0xf]
      %v1134 = vld [vmem:[%s1126 + $0x1c] sm:$0xf]
      %v1135 = vld [vmem:[%s1126 + $0x20] sm:$0xf]
      %v1136 = vld [vmem:[%s1126 + $0x24] sm:$0xf]
      %v1137 = vld [vmem:[%s1126 + $0x28] sm:$0xf]
      %v1138 = vld [vmem:[%s1126 + $0x2c] sm:$0xf]
      %v1139 = vld [vmem:[%s1126 + $0x30] sm:$0xf]
      %v1140 = vld [vmem:[%s1126 + $0x34] sm:$0xf]
      %v1141 = vld [vmem:[%s1126 + $0x38] sm:$0xf]
      %v1142 = vld [vmem:[%s1126 + $0x3c] sm:$0xf]
      %v1143 = vunpack.c.l.b16 %v1027
      %v1144 = vunpack.c.l.b16 %v1041
      %v1145 = vunpack.c.l.b16 %v1055
      %v1146 = vunpack.c.l.b16 %v1069
      %v1147 = vunpack.c.l.b16 %v1083
      %v1148 = vunpack.c.l.b16 %v1097
      %v1149 = vunpack.c.l.b16 %v1111
      %v1150 = vunpack.c.l.b16 %v1125
      %v1151 = vpack.c.b16 %v1144, %v1143
      %v1152 = vpack.c.b16 %v1146, %v1145
      %v1153 = vpack.c.b16 %v1148, %v1147
      %v1154 = vpack.c.b16 %v1150, %v1149
      %v1175 = vunpack.c.l.b16 %v1127
      %v1176 = vunpack.c.l.b16 %v1128
      %v1177 = vunpack.c.l.b16 %v1129
      %v1178 = vunpack.c.l.b16 %v1130
      %v1179 = vunpack.c.l.b16 %v1131
      %v1180 = vunpack.c.l.b16 %v1132
      %v1181 = vunpack.c.l.b16 %v1133
      %v1182 = vunpack.c.l.b16 %v1134
      %v1183 = vunpack.c.l.b16 %v1135
      %v1184 = vunpack.c.l.b16 %v1136
      %v1185 = vunpack.c.l.b16 %v1137
      %v1186 = vunpack.c.l.b16 %v1138
      %v1187 = vunpack.c.l.b16 %v1139
      %v1188 = vunpack.c.l.b16 %v1140
      %v1189 = vunpack.c.l.b16 %v1141
      %v1190 = vunpack.c.l.b16 %v1142
      %v1191 = vpack.c.b16 %v1176, %v1175
      %v1192 = vpack.c.b16 %v1178, %v1177
      %v1193 = vpack.c.b16 %v1180, %v1179
      %v1194 = vpack.c.b16 %v1182, %v1181
      %v1195 = vpack.c.b16 %v1184, %v1183
      %v1196 = vpack.c.b16 %v1186, %v1185
      %v1197 = vpack.c.b16 %v1188, %v1187
      %v1198 = vpack.c.b16 %v1190, %v1189
      %1207 = vmatpush.bf16.msra.mxu0 %v1198
      %1208 = vmatpush.bf16.msra.mxu0 %v1197
      %1209 = vmatpush.bf16.msra.mxu0 %v1196
      %1210 = vmatpush.bf16.msra.mxu0 %v1195
      %1211 = vmatpush.bf16.msra.mxu0 %v1194
      %1212 = vmatpush.bf16.msra.mxu0 %v1193
      %1213 = vmatpush.bf16.msra.mxu0 %v1192
      %1214 = vmatpush.bf16.msra.mxu0 %v1191
      %1215 = vmatmul.bf16.gmra.mxu0 %v1151
      %v1216 = vpop.f32.mrf.mxu0
      %v1217 = vadd.f32 0.0, %v1216
      %v1218 = vpop.f32.mrf.mxu0
      %v1219 = vadd.f32 0.0, %v1218
      %1220 = vmatmul.bf16.gmra.mxu0 %v1152
      %v1221 = vpop.f32.mrf.mxu0
      %v1222 = vadd.f32 0.0, %v1221
      %v1223 = vpop.f32.mrf.mxu0
      %v1224 = vadd.f32 0.0, %v1223
      %1225 = vmatmul.bf16.gmra.mxu0 %v1153
      %v1226 = vpop.f32.mrf.mxu0
      %v1227 = vadd.f32 0.0, %v1226
      %v1228 = vpop.f32.mrf.mxu0
      %v1229 = vadd.f32 0.0, %v1228
      %1230 = vmatmul.bf16.gmra.mxu0 %v1154
      %v1231 = vpop.f32.mrf.mxu0
      %v1232 = vadd.f32 0.0, %v1231
      %v1233 = vpop.f32.mrf.mxu0
      %v1234 = vadd.f32 0.0, %v1233
      %1235 = vdwg.mxu0
      %v1236 = vadd.f32 %v990, %v1217
      %v1237 = vadd.f32 %v991, %v1219
      %v1238 = vadd.f32 %v992, %v1222
      %v1239 = vadd.f32 %v993, %v1224
      %v1240 = vadd.f32 %v994, %v1227
      %v1241 = vadd.f32 %v995, %v1229
      %v1242 = vadd.f32 %v996, %v1232
      %v1243 = vadd.f32 %v997, %v1234
      %s1244 = scalar_lea.vmem %s210, 8
      %v1245 = vld [vmem:[%s1244] sm:$0xf]
      %v1246 = vld [vmem:[%s1244 + $0x8] sm:$0xf]
      %v1247 = vld [vmem:[%s1244 + $0x10] sm:$0xf]
      %v1248 = vld [vmem:[%s1244 + $0x18] sm:$0xf]
      %v1249 = vld [vmem:[%s1244 + $0x20] sm:$0xf]
      %v1250 = vld [vmem:[%s1244 + $0x28] sm:$0xf]
      %v1251 = vld [vmem:[%s1244 + $0x30] sm:$0xf]
      %v1252 = vld [vmem:[%s1244 + $0x38] sm:$0xf]
      %s1253 = scalar_lea.vmem %s215, 384
      %v1254 = vld [vmem:[%s1253] sm:$0xf]
      %v1255 = vld [vmem:[%s1253 + $0x4] sm:$0xf]
      %v1256 = vld [vmem:[%s1253 + $0x8] sm:$0xf]
      %v1257 = vld [vmem:[%s1253 + $0xc] sm:$0xf]
      %v1258 = vld [vmem:[%s1253 + $0x10] sm:$0xf]
      %v1259 = vld [vmem:[%s1253 + $0x14] sm:$0xf]
      %v1260 = vld [vmem:[%s1253 + $0x18] sm:$0xf]
      %v1261 = vld [vmem:[%s1253 + $0x1c] sm:$0xf]
      %v1262 = vld [vmem:[%s1253 + $0x20] sm:$0xf]
      %v1263 = vld [vmem:[%s1253 + $0x24] sm:$0xf]
      %v1264 = vld [vmem:[%s1253 + $0x28] sm:$0xf]
      %v1265 = vld [vmem:[%s1253 + $0x2c] sm:$0xf]
      %v1266 = vld [vmem:[%s1253 + $0x30] sm:$0xf]
      %v1267 = vld [vmem:[%s1253 + $0x34] sm:$0xf]
      %v1268 = vld [vmem:[%s1253 + $0x38] sm:$0xf]
      %v1269 = vld [vmem:[%s1253 + $0x3c] sm:$0xf]
      %v1278 = vunpack.c.l.b16 %v1245
      %v1279 = vunpack.c.l.b16 %v1246
      %v1280 = vunpack.c.l.b16 %v1247
      %v1281 = vunpack.c.l.b16 %v1248
      %v1282 = vunpack.c.l.b16 %v1249
      %v1283 = vunpack.c.l.b16 %v1250
      %v1284 = vunpack.c.l.b16 %v1251
      %v1285 = vunpack.c.l.b16 %v1252
      %v1286 = vpack.c.b16 %v1279, %v1278
      %v1287 = vpack.c.b16 %v1281, %v1280
      %v1288 = vpack.c.b16 %v1283, %v1282
      %v1289 = vpack.c.b16 %v1285, %v1284
      %v1310 = vunpack.c.l.b16 %v1254
      %v1311 = vunpack.c.l.b16 %v1255
      %v1312 = vunpack.c.l.b16 %v1256
      %v1313 = vunpack.c.l.b16 %v1257
      %v1314 = vunpack.c.l.b16 %v1258
      %v1315 = vunpack.c.l.b16 %v1259
      %v1316 = vunpack.c.l.b16 %v1260
      %v1317 = vunpack.c.l.b16 %v1261
      %v1318 = vunpack.c.l.b16 %v1262
      %v1319 = vunpack.c.l.b16 %v1263
      %v1320 = vunpack.c.l.b16 %v1264
      %v1321 = vunpack.c.l.b16 %v1265
      %v1322 = vunpack.c.l.b16 %v1266
      %v1323 = vunpack.c.l.b16 %v1267
      %v1324 = vunpack.c.l.b16 %v1268
      %v1325 = vunpack.c.l.b16 %v1269
      %v1326 = vpack.c.b16 %v1311, %v1310
      %v1327 = vpack.c.b16 %v1313, %v1312
      %v1328 = vpack.c.b16 %v1315, %v1314
      %v1329 = vpack.c.b16 %v1317, %v1316
      %v1330 = vpack.c.b16 %v1319, %v1318
      %v1331 = vpack.c.b16 %v1321, %v1320
      %v1332 = vpack.c.b16 %v1323, %v1322
      %v1333 = vpack.c.b16 %v1325, %v1324
      %1342 = vmatpush.bf16.msra.mxu0 %v1333
      %1343 = vmatpush.bf16.msra.mxu0 %v1332
      %1344 = vmatpush.bf16.msra.mxu0 %v1331
      %1345 = vmatpush.bf16.msra.mxu0 %v1330
      %1346 = vmatpush.bf16.msra.mxu0 %v1329
      %1347 = vmatpush.bf16.msra.mxu0 %v1328
      %1348 = vmatpush.bf16.msra.mxu0 %v1327
      %1349 = vmatpush.bf16.msra.mxu0 %v1326
      %1350 = vmatmul.bf16.gmra.mxu0 %v1286
      %v1351 = vpop.f32.mrf.mxu0
      %v1352 = vadd.f32 0.0, %v1351
      %v1353 = vpop.f32.mrf.mxu0
      %v1354 = vadd.f32 0.0, %v1353
      %1355 = vmatmul.bf16.gmra.mxu0 %v1287
      %v1356 = vpop.f32.mrf.mxu0
      %v1357 = vadd.f32 0.0, %v1356
      %v1358 = vpop.f32.mrf.mxu0
      %v1359 = vadd.f32 0.0, %v1358
      %1360 = vmatmul.bf16.gmra.mxu0 %v1288
      %v1361 = vpop.f32.mrf.mxu0
      %v1362 = vadd.f32 0.0, %v1361
      %v1363 = vpop.f32.mrf.mxu0
      %v1364 = vadd.f32 0.0, %v1363
      %1365 = vmatmul.bf16.gmra.mxu0 %v1289
      %v1366 = vpop.f32.mrf.mxu0
      %v1367 = vadd.f32 0.0, %v1366
      %v1368 = vpop.f32.mrf.mxu0
      %v1369 = vadd.f32 0.0, %v1368
      %1370 = vdwg.mxu0
      %v1371 = vadd.f32 %v1236, %v1352
      %v1372 = vadd.f32 %v1237, %v1354
      %v1373 = vadd.f32 %v1238, %v1357
      %v1374 = vadd.f32 %v1239, %v1359
      %v1375 = vadd.f32 %v1240, %v1362
      %v1376 = vadd.f32 %v1241, %v1364
      %v1377 = vadd.f32 %v1242, %v1367
      %v1378 = vadd.f32 %v1243, %v1369
      %s1379 = scalar_lea.vmem %s210, 80
      %v1380 = vld [vmem:[%s1379] sm:$0xf]
      %v1381 = vld [vmem:[%s1379 + $0x8] sm:$0xf]
      %v1382 = vld [vmem:[%s1379 + $0x10] sm:$0xf]
      %v1383 = vld [vmem:[%s1379 + $0x18] sm:$0xf]
      %v1384 = vld [vmem:[%s1379 + $0x20] sm:$0xf]
      %v1385 = vld [vmem:[%s1379 + $0x28] sm:$0xf]
      %v1386 = vld [vmem:[%s1379 + $0x30] sm:$0xf]
      %v1387 = vld [vmem:[%s1379 + $0x38] sm:$0xf]
      %s1388 = scalar_lea.vmem %s215, 448
      %v1389 = vld [vmem:[%s1388] sm:$0xf]
      %v1390 = vld [vmem:[%s1388 + $0x4] sm:$0xf]
      %v1391 = vld [vmem:[%s1388 + $0x8] sm:$0xf]
      %v1392 = vld [vmem:[%s1388 + $0xc] sm:$0xf]
      %v1393 = vld [vmem:[%s1388 + $0x10] sm:$0xf]
      %v1394 = vld [vmem:[%s1388 + $0x14] sm:$0xf]
      %v1395 = vld [vmem:[%s1388 + $0x18] sm:$0xf]
      %v1396 = vld [vmem:[%s1388 + $0x1c] sm:$0xf]
      %v1397 = vld [vmem:[%s1388 + $0x20] sm:$0xf]
      %v1398 = vld [vmem:[%s1388 + $0x24] sm:$0xf]
      %v1399 = vld [vmem:[%s1388 + $0x28] sm:$0xf]
      %v1400 = vld [vmem:[%s1388 + $0x2c] sm:$0xf]
      %v1401 = vld [vmem:[%s1388 + $0x30] sm:$0xf]
      %v1402 = vld [vmem:[%s1388 + $0x34] sm:$0xf]
      %v1403 = vld [vmem:[%s1388 + $0x38] sm:$0xf]
      %v1404 = vld [vmem:[%s1388 + $0x3c] sm:$0xf]
      %v1413 = vunpack.c.l.b16 %v1380
      %v1414 = vunpack.c.l.b16 %v1381
      %v1415 = vunpack.c.l.b16 %v1382
      %v1416 = vunpack.c.l.b16 %v1383
      %v1417 = vunpack.c.l.b16 %v1384
      %v1418 = vunpack.c.l.b16 %v1385
      %v1419 = vunpack.c.l.b16 %v1386
      %v1420 = vunpack.c.l.b16 %v1387
      %v1421 = vpack.c.b16 %v1414, %v1413
      %v1422 = vpack.c.b16 %v1416, %v1415
      %v1423 = vpack.c.b16 %v1418, %v1417
      %v1424 = vpack.c.b16 %v1420, %v1419
      %v1445 = vunpack.c.l.b16 %v1389
      %v1446 = vunpack.c.l.b16 %v1390
      %v1447 = vunpack.c.l.b16 %v1391
      %v1448 = vunpack.c.l.b16 %v1392
      %v1449 = vunpack.c.l.b16 %v1393
      %v1450 = vunpack.c.l.b16 %v1394
      %v1451 = vunpack.c.l.b16 %v1395
      %v1452 = vunpack.c.l.b16 %v1396
      %v1453 = vunpack.c.l.b16 %v1397
      %v1454 = vunpack.c.l.b16 %v1398
      %v1455 = vunpack.c.l.b16 %v1399
      %v1456 = vunpack.c.l.b16 %v1400
      %v1457 = vunpack.c.l.b16 %v1401
      %v1458 = vunpack.c.l.b16 %v1402
      %v1459 = vunpack.c.l.b16 %v1403
      %v1460 = vunpack.c.l.b16 %v1404
      %v1461 = vpack.c.b16 %v1446, %v1445
      %v1462 = vpack.c.b16 %v1448, %v1447
      %v1463 = vpack.c.b16 %v1450, %v1449
      %v1464 = vpack.c.b16 %v1452, %v1451
      %v1465 = vpack.c.b16 %v1454, %v1453
      %v1466 = vpack.c.b16 %v1456, %v1455
      %v1467 = vpack.c.b16 %v1458, %v1457
      %v1468 = vpack.c.b16 %v1460, %v1459
      %1477 = vmatpush.bf16.msra.mxu0 %v1468
      %1478 = vmatpush.bf16.msra.mxu0 %v1467
      %1479 = vmatpush.bf16.msra.mxu0 %v1466
      %1480 = vmatpush.bf16.msra.mxu0 %v1465
      %1481 = vmatpush.bf16.msra.mxu0 %v1464
      %1482 = vmatpush.bf16.msra.mxu0 %v1463
      %1483 = vmatpush.bf16.msra.mxu0 %v1462
      %1484 = vmatpush.bf16.msra.mxu0 %v1461
      %1485 = vmatmul.bf16.gmra.mxu0 %v1421
      %v1486 = vpop.f32.mrf.mxu0
      %v1487 = vadd.f32 0.0, %v1486
      %v1488 = vpop.f32.mrf.mxu0
      %v1489 = vadd.f32 0.0, %v1488
      %1490 = vmatmul.bf16.gmra.mxu0 %v1422
      %v1491 = vpop.f32.mrf.mxu0
      %v1492 = vadd.f32 0.0, %v1491
      %v1493 = vpop.f32.mrf.mxu0
      %v1494 = vadd.f32 0.0, %v1493
      %1495 = vmatmul.bf16.gmra.mxu0 %v1423
      %v1496 = vpop.f32.mrf.mxu0
      %v1497 = vadd.f32 0.0, %v1496
      %v1498 = vpop.f32.mrf.mxu0
      %v1499 = vadd.f32 0.0, %v1498
      %1500 = vmatmul.bf16.gmra.mxu0 %v1424
      %v1501 = vpop.f32.mrf.mxu0
      %v1502 = vadd.f32 0.0, %v1501
      %v1503 = vpop.f32.mrf.mxu0
      %v1504 = vadd.f32 0.0, %v1503
      %1505 = vdwg.mxu0
      %v1506 = vadd.f32 %v1371, %v1487
      %v1507 = vadd.f32 %v1372, %v1489
      %v1508 = vadd.f32 %v1373, %v1492
      %v1509 = vadd.f32 %v1374, %v1494
      %v1510 = vadd.f32 %v1375, %v1497
      %v1511 = vadd.f32 %v1376, %v1499
      %v1512 = vadd.f32 %v1377, %v1502
      %v1513 = vadd.f32 %v1378, %v1504
      %v1514 = vld [vmem:[%s1244] sm:$0xf]
      %v1515 = vld [vmem:[%s1244 + $0x4] sm:$0x1]
      %v1516 = vld [vmem:[%s1244 + $0x8] sm:$0xf]
      %v1517 = vld [vmem:[%s1244 + $0xc] sm:$0x1]
      %v1518 = vld [vmem:[%s1244 + $0x10] sm:$0xf]
      %v1519 = vld [vmem:[%s1244 + $0x14] sm:$0x1]
      %v1520 = vld [vmem:[%s1244 + $0x18] sm:$0xf]
      %v1521 = vld [vmem:[%s1244 + $0x1c] sm:$0x1]
      %v1522 = vld [vmem:[%s1244 + $0x20] sm:$0xf]
      %v1523 = vld [vmem:[%s1244 + $0x24] sm:$0x1]
      %v1524 = vld [vmem:[%s1244 + $0x28] sm:$0xf]
      %v1525 = vld [vmem:[%s1244 + $0x2c] sm:$0x1]
      %v1526 = vld [vmem:[%s1244 + $0x30] sm:$0xf]
      %v1527 = vld [vmem:[%s1244 + $0x34] sm:$0x1]
      %v1528 = vld [vmem:[%s1244 + $0x38] sm:$0xf]
      %v1529 = vld [vmem:[%s1244 + $0x3c] sm:$0x1]
      %v1531 = vshrl.u32 %v1514, 16
      %v1533 = vrot.slane %v1531, 4
      %v1534 = vshll.u32 %v1514, 16
      %v1536 = vrot.slane %v1534, 5
      %v1537 = vor.u32 %v1533, %v1536
      %v1538 = vrot.slane %v1537, 4
      %v1540 = vshll.u32 %v1515, 16
      %v1542 = vrot.slane %v1540, 5
      %v1543 = vsel %vm497, %v1538, %v1542
      %v1545 = vshrl.u32 %v1516, 16
      %v1547 = vrot.slane %v1545, 4
      %v1548 = vshll.u32 %v1516, 16
      %v1550 = vrot.slane %v1548, 5
      %v1551 = vor.u32 %v1547, %v1550
      %v1552 = vrot.slane %v1551, 4
      %v1554 = vshll.u32 %v1517, 16
      %v1556 = vrot.slane %v1554, 5
      %v1557 = vsel %vm497, %v1552, %v1556
      %v1559 = vshrl.u32 %v1518, 16
      %v1561 = vrot.slane %v1559, 4
      %v1562 = vshll.u32 %v1518, 16
      %v1564 = vrot.slane %v1562, 5
      %v1565 = vor.u32 %v1561, %v1564
      %v1566 = vrot.slane %v1565, 4
      %v1568 = vshll.u32 %v1519, 16
      %v1570 = vrot.slane %v1568, 5
      %v1571 = vsel %vm497, %v1566, %v1570
      %v1573 = vshrl.u32 %v1520, 16
      %v1575 = vrot.slane %v1573, 4
      %v1576 = vshll.u32 %v1520, 16
      %v1578 = vrot.slane %v1576, 5
      %v1579 = vor.u32 %v1575, %v1578
      %v1580 = vrot.slane %v1579, 4
      %v1582 = vshll.u32 %v1521, 16
      %v1584 = vrot.slane %v1582, 5
      %v1585 = vsel %vm497, %v1580, %v1584
      %v1587 = vshrl.u32 %v1522, 16
      %v1589 = vrot.slane %v1587, 4
      %v1590 = vshll.u32 %v1522, 16
      %v1592 = vrot.slane %v1590, 5
      %v1593 = vor.u32 %v1589, %v1592
      %v1594 = vrot.slane %v1593, 4
      %v1596 = vshll.u32 %v1523, 16
      %v1598 = vrot.slane %v1596, 5
      %v1599 = vsel %vm497, %v1594, %v1598
      %v1601 = vshrl.u32 %v1524, 16
      %v1603 = vrot.slane %v1601, 4
      %v1604 = vshll.u32 %v1524, 16
      %v1606 = vrot.slane %v1604, 5
      %v1607 = vor.u32 %v1603, %v1606
      %v1608 = vrot.slane %v1607, 4
      %v1610 = vshll.u32 %v1525, 16
      %v1612 = vrot.slane %v1610, 5
      %v1613 = vsel %vm497, %v1608, %v1612
      %v1615 = vshrl.u32 %v1526, 16
      %v1617 = vrot.slane %v1615, 4
      %v1618 = vshll.u32 %v1526, 16
      %v1620 = vrot.slane %v1618, 5
      %v1621 = vor.u32 %v1617, %v1620
      %v1622 = vrot.slane %v1621, 4
      %v1624 = vshll.u32 %v1527, 16
      %v1626 = vrot.slane %v1624, 5
      %v1627 = vsel %vm497, %v1622, %v1626
      %v1629 = vshrl.u32 %v1528, 16
      %v1631 = vrot.slane %v1629, 4
      %v1632 = vshll.u32 %v1528, 16
      %v1634 = vrot.slane %v1632, 5
      %v1635 = vor.u32 %v1631, %v1634
      %v1636 = vrot.slane %v1635, 4
      %v1638 = vshll.u32 %v1529, 16
      %v1640 = vrot.slane %v1638, 5
      %v1641 = vsel %vm497, %v1636, %v1640
      %s1642 = scalar_lea.vmem %s215, 512
      %v1643 = vld [vmem:[%s1642] sm:$0xf]
      %v1644 = vld [vmem:[%s1642 + $0x4] sm:$0xf]
      %v1645 = vld [vmem:[%s1642 + $0x8] sm:$0xf]
      %v1646 = vld [vmem:[%s1642 + $0xc] sm:$0xf]
      %v1647 = vld [vmem:[%s1642 + $0x10] sm:$0xf]
      %v1648 = vld [vmem:[%s1642 + $0x14] sm:$0xf]
      %v1649 = vld [vmem:[%s1642 + $0x18] sm:$0xf]
      %v1650 = vld [vmem:[%s1642 + $0x1c] sm:$0xf]
      %v1651 = vld [vmem:[%s1642 + $0x20] sm:$0xf]
      %v1652 = vld [vmem:[%s1642 + $0x24] sm:$0xf]
      %v1653 = vld [vmem:[%s1642 + $0x28] sm:$0xf]
      %v1654 = vld [vmem:[%s1642 + $0x2c] sm:$0xf]
      %v1655 = vld [vmem:[%s1642 + $0x30] sm:$0xf]
      %v1656 = vld [vmem:[%s1642 + $0x34] sm:$0xf]
      %v1657 = vld [vmem:[%s1642 + $0x38] sm:$0xf]
      %v1658 = vld [vmem:[%s1642 + $0x3c] sm:$0xf]
      %v1659 = vunpack.c.l.b16 %v1543
      %v1660 = vunpack.c.l.b16 %v1557
      %v1661 = vunpack.c.l.b16 %v1571
      %v1662 = vunpack.c.l.b16 %v1585
      %v1663 = vunpack.c.l.b16 %v1599
      %v1664 = vunpack.c.l.b16 %v1613
      %v1665 = vunpack.c.l.b16 %v1627
      %v1666 = vunpack.c.l.b16 %v1641
      %v1667 = vpack.c.b16 %v1660, %v1659
      %v1668 = vpack.c.b16 %v1662, %v1661
      %v1669 = vpack.c.b16 %v1664, %v1663
      %v1670 = vpack.c.b16 %v1666, %v1665
      %v1691 = vunpack.c.l.b16 %v1643
      %v1692 = vunpack.c.l.b16 %v1644
      %v1693 = vunpack.c.l.b16 %v1645
      %v1694 = vunpack.c.l.b16 %v1646
      %v1695 = vunpack.c.l.b16 %v1647
      %v1696 = vunpack.c.l.b16 %v1648
      %v1697 = vunpack.c.l.b16 %v1649
      %v1698 = vunpack.c.l.b16 %v1650
      %v1699 = vunpack.c.l.b16 %v1651
      %v1700 = vunpack.c.l.b16 %v1652
      %v1701 = vunpack.c.l.b16 %v1653
      %v1702 = vunpack.c.l.b16 %v1654
      %v1703 = vunpack.c.l.b16 %v1655
      %v1704 = vunpack.c.l.b16 %v1656
      %v1705 = vunpack.c.l.b16 %v1657
      %v1706 = vunpack.c.l.b16 %v1658
      %v1707 = vpack.c.b16 %v1692, %v1691
      %v1708 = vpack.c.b16 %v1694, %v1693
      %v1709 = vpack.c.b16 %v1696, %v1695
      %v1710 = vpack.c.b16 %v1698, %v1697
      %v1711 = vpack.c.b16 %v1700, %v1699
      %v1712 = vpack.c.b16 %v1702, %v1701
      %v1713 = vpack.c.b16 %v1704, %v1703
      %v1714 = vpack.c.b16 %v1706, %v1705
      %1723 = vmatpush.bf16.msra.mxu0 %v1714
      %1724 = vmatpush.bf16.msra.mxu0 %v1713
      %1725 = vmatpush.bf16.msra.mxu0 %v1712
      %1726 = vmatpush.bf16.msra.mxu0 %v1711
      %1727 = vmatpush.bf16.msra.mxu0 %v1710
      %1728 = vmatpush.bf16.msra.mxu0 %v1709
      %1729 = vmatpush.bf16.msra.mxu0 %v1708
      %1730 = vmatpush.bf16.msra.mxu0 %v1707
      %1731 = vmatmul.bf16.gmra.mxu0 %v1667
      %v1732 = vpop.f32.mrf.mxu0
      %v1733 = vadd.f32 0.0, %v1732
      %v1734 = vpop.f32.mrf.mxu0
      %v1735 = vadd.f32 0.0, %v1734
      %1736 = vmatmul.bf16.gmra.mxu0 %v1668
      %v1737 = vpop.f32.mrf.mxu0
      %v1738 = vadd.f32 0.0, %v1737
      %v1739 = vpop.f32.mrf.mxu0
      %v1740 = vadd.f32 0.0, %v1739
      %1741 = vmatmul.bf16.gmra.mxu0 %v1669
      %v1742 = vpop.f32.mrf.mxu0
      %v1743 = vadd.f32 0.0, %v1742
      %v1744 = vpop.f32.mrf.mxu0
      %v1745 = vadd.f32 0.0, %v1744
      %1746 = vmatmul.bf16.gmra.mxu0 %v1670
      %v1747 = vpop.f32.mrf.mxu0
      %v1748 = vadd.f32 0.0, %v1747
      %v1749 = vpop.f32.mrf.mxu0
      %v1750 = vadd.f32 0.0, %v1749
      %1751 = vdwg.mxu0
      %v1752 = vadd.f32 %v1506, %v1733
      %v1753 = vadd.f32 %v1507, %v1735
      %v1754 = vadd.f32 %v1508, %v1738
      %v1755 = vadd.f32 %v1509, %v1740
      %v1756 = vadd.f32 %v1510, %v1743
      %v1757 = vadd.f32 %v1511, %v1745
      %v1758 = vadd.f32 %v1512, %v1748
      %v1759 = vadd.f32 %v1513, %v1750
      %v1760 = vld [vmem:[%s218] sm:$0x1]
      %v1762 = vperm.slane %v1760, 0
      %v1764 = vadd.f32 %v1752, %v1762
      %v1765 = vadd.f32 %v1753, %v1762
      %v1766 = vadd.f32 %v1754, %v1762
      %v1767 = vadd.f32 %v1755, %v1762
      %v1768 = vadd.f32 %v1756, %v1762
      %v1769 = vadd.f32 %v1757, %v1762
      %v1770 = vadd.f32 %v1758, %v1762
      %v1771 = vadd.f32 %v1759, %v1762
      %v1772 = vmax.f32 %v1764, 0.0
      %v1773 = vmax.f32 %v1765, 0.0
      %v1774 = vmax.f32 %v1766, 0.0
      %v1775 = vmax.f32 %v1767, 0.0
      %v1776 = vmax.f32 %v1768, 0.0
      %v1777 = vmax.f32 %v1769, 0.0
      %v1778 = vmax.f32 %v1770, 0.0
      %v1779 = vmax.f32 %v1771, 0.0
      %v1780 = vpack.c.bf16 %v1772, %v1772
      %v1781 = vpack.c.bf16 %v1773, %v1773
      %v1782 = vpack.c.bf16 %v1774, %v1774
      %v1783 = vpack.c.bf16 %v1775, %v1775
      %v1784 = vpack.c.bf16 %v1776, %v1776
      %v1785 = vpack.c.bf16 %v1777, %v1777
      %v1786 = vpack.c.bf16 %v1778, %v1778
      %v1787 = vpack.c.bf16 %v1779, %v1779
      %1788 = vst [vmem:[%s226] sm:$0xf] %v1780
      %1789 = vst [vmem:[%s226 + $0x4] sm:$0xf] %v1781
      %1790 = vst [vmem:[%s226 + $0x8] sm:$0xf] %v1782
      %1791 = vst [vmem:[%s226 + $0xc] sm:$0xf] %v1783
      %1792 = vst [vmem:[%s226 + $0x10] sm:$0xf] %v1784
      %1793 = vst [vmem:[%s226 + $0x14] sm:$0xf] %v1785
      %1794 = vst [vmem:[%s226 + $0x18] sm:$0xf] %v1786
      %1795 = vst [vmem:[%s226 + $0x1c] sm:$0xf] %v1787
      %p1796 = scmp.lt.s32.totalorder %s18, 1
      %s1797 = scalar_select %p1796, %s18, 1
      %p1798 = scmp.lt.s32.totalorder %s19, 0
      %s1799 = scalar_select %p1798, %s19, 0
      %s1800 = smul.addr %s1797, 8
      %s1801 = sadd.s32 %s1799, %s1800
      %s1802 = smul.addr %s1801, 4
      %s1803 = scalar_lea.vmem %s3, %s1802
      // Predicated region
      $region33: #{bottleneck_forward.4} parent=31 // pred_check
        %p1804 = pneg %p124
      $region34: #{bottleneck_forward.4} parent=31 // pred_check_branch
        %1806 = sbr.rel (%p1804) target = $region36
      $region35: #{bottleneck_forward.4} parent=31 // pred_region
        _
      $region36: #{bottleneck_forward.4} parent=31 // pred_fallthru
        _
    $region32: #{bottleneck_forward.4} parent=5 // pred_fallthru
      _
    %p1807 = scmp.le.s32.totalorder 2, %s9
    // Predicated region
    $region37: #{bottleneck_forward.4} parent=5 // pred_check
      %p1808 = pneg %p1807
    $region38: #{bottleneck_forward.4} parent=5 // pred_check_branch
      %1810 = sbr.rel (%p1808) target = $region40
    $region39: #{bottleneck_forward.4} parent=5 // pred_region
      %s1811 = ssub.s32 %s9, 2
      // Predicated region
      $region41: #{bottleneck_forward.4} parent=39 // pred_check
        %p1812 = pneg %p130
      $region42: #{bottleneck_forward.4} parent=39 // pred_check_branch
        %1814 = sbr.rel (%p1812) target = $region44
      $region43: #{bottleneck_forward.4} parent=39 // pred_region
        %p1815 = scmp.lt.s32.totalorder %s20, 1
        %s1816 = scalar_select %p1815, %s20, 1
        %p1817 = scmp.lt.s32.totalorder %s21, 0
        %s1818 = scalar_select %p1817, %s21, 0
        %s1819 = smul.addr %s1816, 8
        %s1820 = sadd.s32 %s1818, %s1819
        %s1821 = smul.addr %s1820, 4
        %s1822 = scalar_lea.vmem %s3, %s1821
      $region44: #{bottleneck_forward.4} parent=39 // pred_fallthru
        _
    $region40: #{bottleneck_forward.4} parent=5 // pred_fallthru
      _
  $region6: #{bottleneck_forward.4} parent=0 // loop_footer
    %s13 = sadd.s32 1, %s9
  $region7: #{bottleneck_forward.4} parent=0 // loop_footer_branch
    %8 = sbr.rel target = $region3
  $region8: #{bottleneck_forward.4} parent=0 // loop_exit
    _

</llo_original>
